<compile_context>
chip_gen: v7x
topology: tpu7x:2x2x1
jax: 0.10.0
libtpu: 0.0.40
codegen_flags: <defaults>
</compile_context>

<pallas_src>
import jax
import jax.numpy as jnp
from jax.experimental import pallas as pl
from jax.experimental.pallas import tpu as pltpu


# ----------------------------- Pallas kernel ------------------------------- #

def bimodal_fusion_kernel(xy_ref, mask_ref,
                          w1_ref, b1_ref, w2_ref, b2_ref, wm_ref, bm_ref,
                          ln_ref, pw_ref, pb_ref,
                          out_ref):
    """One batch tile of BimodalFusion (both modalities fused in one body).

    xy_ref   : (2, TB, S, H)   stacked [x; y] activations for this batch tile
    mask_ref : (2, TB, S)      stacked [x_mask; y_mask]; 1.0 == padded
    w1/b1    : (2, H, MID) / (2, MID)        AttFlat MLP layer 1 (x, y stacked)
    w2/b2    : (2, MID, 1) / (2, 1)          AttFlat MLP layer 2 (glimpses == 1)
    wm/bm    : (2, H, OUT) / (2, OUT)        AttFlat linear_merge
    ln_ref   : (2, OUT)                      row 0 = gamma, row 1 = beta
    pw/pb    : (OUT, ANS_PAD) / (1, ANS_PAD) final projection (lane-padded)
    out_ref  : (TB, ANS_PAD)
    """
    P, TB, S, H = xy_ref.shape
    MID = w1_ref.shape[-1]
    OUT = wm_ref.shape[-1]

    xy = xy_ref[...]          # keep native dtype (bf16 feeds the MXU directly)
    mask = mask_ref[...]

    # AttFlat MLP hidden layer: one batched matmul over both modalities with
    # M = TB*S rows (instead of per-batch tiny (S, H) tiles).
    h = jax.lax.dot_general(
        xy.reshape(P, TB * S, H), w1_ref[...],
        dimension_numbers=(((2,), (1,)), ((0,), (0,))),
        preferred_element_type=jnp.float32)                 # (2, TB*S, MID) f32
    h = h.reshape(P, TB, S, MID)

    b1 = b1_ref[...]
    w2 = w2_ref[...]
    b2 = b2_ref[...]
    wm = wm_ref[...]
    bm = bm_ref[...]

    z = jnp.zeros((TB, OUT), jnp.float32)
    for pmod in range(P):                 # static unroll over the 2 modalities
        hp = jnp.maximum(h[pmod] + b1[pmod], 0.0)   # ReLU; dropout == identity
        # attention logits -> (TB, S); fusion_flat_glimpses == 1
        att = jnp.einsum('bsm,mg->bsg', hp, w2[pmod],
                         preferred_element_type=jnp.float32)[..., 0] + b2[pmod, 0]
        # masked softmax over the sequence axis
        att = jnp.where(mask[pmod] > 0.5, -1.0e9, att)
        att = att - jnp.max(att, axis=-1, keepdims=True)
        e = jnp.exp(att)
        att = e * pl.reciprocal(jnp.sum(e, axis=-1, keepdims=True), approx=True)
        # attention pooling on the MXU (flash-style p@V with q == 1)
        pooled = jnp.einsum('bqs,bsh->bqh',
                            att[:, None, :].astype(xy.dtype), xy[pmod],
                            preferred_element_type=jnp.float32)[:, 0, :]  # (TB, H)
        # linear_merge, accumulated across modalities (x_att + y_att)
        z = z + jnp.dot(pooled, wm[pmod],
                        preferred_element_type=jnp.float32) + bm[pmod]

    # LayerNorm over the flat_out feature axis.
    # TODO(synk): custom LayerNorm source not provided; standard LN, eps=1e-6.
    mu = jnp.mean(z, axis=-1, keepdims=True)
    var = jnp.mean((z - mu) ** 2, axis=-1, keepdims=True)
    ln = ln_ref[...]
    zn = (z - mu) * jax.lax.rsqrt(var + 1e-6) * ln[0:1, :] + ln[1:2, :]

    # Final projection, stored lane-dense (answer dim padded to 128 lanes).
    out_ref[...] = (jnp.dot(zn, pw_ref[...], preferred_element_type=jnp.float32)
                    + pb_ref[...]).astype(out_ref.dtype)


# ------------------------------ JAX wrapper -------------------------------- #

def _resident_spec(arr):
    """Full-array block whose index_map is constant -> stays resident in VMEM."""
    nd = arr.ndim

    def index_map(i):
        return (0,) * nd

    return pl.BlockSpec(arr.shape, index_map)


def _choose_batch_tile(B, S, H, itemsize, vmem_budget_bytes=40 * 1024 * 1024):
    """Largest batch tile whose pipelined working set stays within the budget.

    Per batch row: 2 modalities x 2 pipeline buffers of the (S, H) input in its
    native dtype, plus ~3x (S, H) of f32 kernel intermediates (MLP hidden,
    attention, pooled).  40 MiB leaves headroom under v7x's 64 MiB physical
    VMEM; v5e/v6e (128 MiB) simply run the same tile.
    """
    bytes_per_row = 2 * S * H * (2 * itemsize + 3 * 4)
    tb = vmem_budget_bytes // max(bytes_per_row, 1)
    return int(max(1, min(tb, B, 512)))


def bimodal_fusion(x, y, x_mask, y_mask, params, *, batch_tile=None,
                   vmem_limit_bytes=48 * 1024 * 1024):
    """BimodalFusion forward (eval mode) as a batch-gridded Pallas TPU kernel."""
    B, S, H = x.shape
    OUT = params['x_wm'].shape[1]
    ANS = params['proj_w'].shape[1]

    # Pack the two modalities into stacked operands (20 kernel refs -> 11).
    # TODO(synk): in a real model, pre-pack the weights once at init time.
    xy = jnp.stack([x, y], axis=0)                                   # (2, B, S, H)
    mask = jnp.stack([x_mask.astype(jnp.float32),
                      y_mask.astype(jnp.float32)], axis=0)           # (2, B, S)
    w1 = jnp.stack([params['x_w1'], params['y_w1']], axis=0)         # (2, H, MID)
    b1 = jnp.concatenate([params['x_b1'], params['y_b1']], axis=0)   # (2, MID)
    w2 = jnp.stack([params['x_w2'], params['y_w2']], axis=0)         # (2, MID, 1)
    b2 = jnp.concatenate([params['x_b2'], params['y_b2']], axis=0)   # (2, 1)
    wm = jnp.stack([params['x_wm'], params['y_wm']], axis=0)         # (2, H, OUT)
    bm = jnp.concatenate([params['x_bm'], params['y_bm']], axis=0)   # (2, OUT)
    ln = jnp.concatenate([params['ln_g'], params['ln_b']], axis=0)   # (2, OUT)

    # Pad the answer dim to a multiple of 128 so the final store is lane-dense;
    # the zero padding is sliced off after the call (exact).
    ANS_P = ((ANS + 127) // 128) * 128
    pw = jnp.zeros((OUT, ANS_P), params['proj_w'].dtype).at[:, :ANS].set(params['proj_w'])
    pb = jnp.zeros((1, ANS_P), params['proj_b'].dtype).at[:, :ANS].set(params['proj_b'])

    # Batch tiling: grid over batch, double-buffered by the Pallas pipeline.
    if batch_tile is None:
        batch_tile = _choose_batch_tile(B, S, H, x.dtype.itemsize)
    TB = min(batch_tile, B)
    if TB < B:
        TB = max(8, (TB // 8) * 8)        # keep (8, 128) block divisibility
    Bp = ((B + TB - 1) // TB) * TB
    if Bp != B:
        xy = jnp.pad(xy, ((0, 0), (0, Bp - B), (0, 0), (0, 0)))
        mask = jnp.pad(mask, ((0, 0), (0, Bp - B), (0, 0)))
    grid = (pl.cdiv(Bp, TB),)

    in_specs = [
        pl.BlockSpec((2, TB, S, H), lambda i: (0, i, 0, 0)),   # x/y activations
        pl.BlockSpec((2, TB, S), lambda i: (0, i, 0)),         # masks
        _resident_spec(w1), _resident_spec(b1),
        _resident_spec(w2), _resident_spec(b2),
        _resident_spec(wm), _resident_spec(bm),
        _resident_spec(ln), _resident_spec(pw), _resident_spec(pb),
    ]
    out_spec = pl.BlockSpec((TB, ANS_P), lambda i: (i, 0))

    out = pl.pallas_call(
        bimodal_fusion_kernel,
        grid=grid,
        in_specs=in_specs,
        out_specs=out_spec,
        out_shape=jax.ShapeDtypeStruct((Bp, ANS_P), jnp.float32),
        compiler_params=pltpu.CompilerParams(
            dimension_semantics=("parallel",),   # megacore-shards batch on v7x
            vmem_limit_bytes=vmem_limit_bytes,
        ),
    )(xy, mask, w1, b1, w2, b2, wm, bm, ln, pw, pb)

    return out[:B, :ANS]


# --------------------------- pure-JAX reference ----------------------------- #

def reference(x, y, x_mask, y_mask, p):
    def attflat(xx, mask, w1, b1, w2, b2, wm, bm):
        h = jax.nn.relu(jnp.einsum('bsh,hm->bsm', xx, w1) + b1[0])
        att = jnp.einsum('bsm,mg->bsg', h, w2)[..., 0] + b2[0, 0]
        att = jnp.where(mask > 0.5, -1.0e9, att)
        att = jax.nn.softmax(att, axis=-1)
        pooled = jnp.sum(att[:, :, None] * xx, axis=1)
        return pooled @ wm + bm[0]

    xa = attflat(x, x_mask, p['x_w1'], p['x_b1'], p['x_w2'], p['x_b2'],
                 p['x_wm'], p['x_bm'])
    ya = attflat(y, y_mask, p['y_w1'], p['y_b1'], p['y_w2'], p['y_b2'],
                 p['y_wm'], p['y_bm'])
    z = xa + ya
    mu = jnp.mean(z, axis=-1, keepdims=True)
    var = jnp.mean((z - mu) ** 2, axis=-1, keepdims=True)
    zn = (z - mu) * jax.lax.rsqrt(var + 1e-6) * p['ln_g'][0] + p['ln_b'][0]
    return zn @ p['proj_w'] + p['proj_b'][0]


# --------------------------------- main ------------------------------------ #

if __name__ == "__main__":
    # opt: fusion_hidden_size=32, fusion_flat_mlp_size=64, fusion_flat_glimpses=1,
    #      fusion_flat_out_size=32, fusion_dropout (inert), answer_size=16
    B, S, H = 2, 8, 32
    MID, G, OUT, ANS = 64, 1, 32, 16

    key = jax.random.PRNGKey(0)
    ks = iter(jax.random.split(key, 24))

    def lin_w(k, fan_in, shape):
        return (jax.random.normal(k, shape, jnp.float32) / jnp.sqrt(fan_in))

    params = {
        # x-AttFlat
        'x_w1': lin_w(next(ks), H, (H, MID)),
        'x_b1': 0.01 * jax.random.normal(next(ks), (1, MID), jnp.float32),
        'x_w2': lin_w(next(ks), MID, (MID, G)),
        'x_b2': 0.01 * jax.random.normal(next(ks), (1, G), jnp.float32),
        'x_wm': lin_w(next(ks), H * G, (H * G, OUT)),
        'x_bm': 0.01 * jax.random.normal(next(ks), (1, OUT), jnp.float32),
        # y-AttFlat
        'y_w1': lin_w(next(ks), H, (H, MID)),
        'y_b1': 0.01 * jax.random.normal(next(ks), (1, MID), jnp.float32),
        'y_w2': lin_w(next(ks), MID, (MID, G)),
        'y_b2': 0.01 * jax.random.normal(next(ks), (1, G), jnp.float32),
        'y_wm': lin_w(next(ks), H * G, (H * G, OUT)),
        'y_bm': 0.01 * jax.random.normal(next(ks), (1, OUT), jnp.float32),
        # projection_norm + projection
        'ln_g': jnp.ones((1, OUT), jnp.float32),
        'ln_b': jnp.zeros((1, OUT), jnp.float32),
        'proj_w': lin_w(next(ks), OUT, (OUT, ANS)),
        'proj_b': 0.01 * jax.random.normal(next(ks), (1, ANS), jnp.float32),
    }

    x = jax.random.normal(next(ks), (B, S, H), jnp.float32)
    y = jax.random.normal(next(ks), (B, S, H), jnp.float32)
    # mask: 1.0 == padded.  batch 0 pads last 2/3 positions; batch 1 pads none.
    x_mask = jnp.zeros((B, S), jnp.float32).at[0, S - 2:].set(1.0)
    y_mask = jnp.zeros((B, S), jnp.float32).at[0, S - 3:].set(1.0)

    out = bimodal_fusion(x, y, x_mask, y_mask, params)
    out = jax.block_until_ready(out)

    ref = reference(x, y, x_mask, y_mask, params)
    assert out.shape == (B, ANS)
    # Tolerance relaxed slightly because the softmax denominator uses the EUP
    # approximate reciprocal (rel. error ~1e-4) instead of an exact divide.
    assert jnp.allclose(out, ref, atol=5e-3, rtol=5e-3), "mismatch vs reference"

    print("KERNEL_OK")
</pallas_src>

<mosaic_0001>
module attributes {stable_mosaic.version = 11 : i64} {
  func.func @bimodal_fusion_kernel(%arg0: i32, %arg1: memref<2x2x8x32xf32, #tpu.memory_space<vmem>>, %arg2: memref<2x2x8xf32, #tpu.memory_space<vmem>>, %arg3: memref<2x32x64xf32, #tpu.memory_space<vmem>>, %arg4: memref<2x64xf32, #tpu.memory_space<vmem>>, %arg5: memref<2x64x1xf32, #tpu.memory_space<vmem>>, %arg6: memref<2x1xf32, #tpu.memory_space<vmem>>, %arg7: memref<2x32x32xf32, #tpu.memory_space<vmem>>, %arg8: memref<2x32xf32, #tpu.memory_space<vmem>>, %arg9: memref<2x32xf32, #tpu.memory_space<vmem>>, %arg10: memref<32x128xf32, #tpu.memory_space<vmem>>, %arg11: memref<1x128xf32, #tpu.memory_space<vmem>>, %arg12: memref<2x128xf32, #tpu.memory_space<vmem>>) attributes {dimension_semantics = [#tpu.dimension_semantics<parallel>], iteration_bounds = array<i64: 1>, scalar_prefetch = 0 : i64, scratch_operands = 0 : i64, tpu.core_type = #tpu.core_type<tc>, window_params = [{transform_indices = @transform_0, window_bounds = array<i64: 2, 2, 8, 32>}, {transform_indices = @transform_1, window_bounds = array<i64: 2, 2, 8>}, {pipeline_mode = #tpu.pipeline_mode<synchronous>, transform_indices = @transform_2, window_bounds = array<i64: 2, 32, 64>}, {pipeline_mode = #tpu.pipeline_mode<synchronous>, transform_indices = @transform_3, window_bounds = array<i64: 2, 64>}, {pipeline_mode = #tpu.pipeline_mode<synchronous>, transform_indices = @transform_4, window_bounds = array<i64: 2, 64, 1>}, {pipeline_mode = #tpu.pipeline_mode<synchronous>, transform_indices = @transform_5, window_bounds = array<i64: 2, 1>}, {pipeline_mode = #tpu.pipeline_mode<synchronous>, transform_indices = @transform_6, window_bounds = array<i64: 2, 32, 32>}, {pipeline_mode = #tpu.pipeline_mode<synchronous>, transform_indices = @transform_7, window_bounds = array<i64: 2, 32>}, {pipeline_mode = #tpu.pipeline_mode<synchronous>, transform_indices = @transform_8, window_bounds = array<i64: 2, 32>}, {pipeline_mode = #tpu.pipeline_mode<synchronous>, transform_indices = @transform_9, window_bounds = array<i64: 32, 128>}, {pipeline_mode = #tpu.pipeline_mode<synchronous>, transform_indices = @transform_10, window_bounds = array<i64: 1, 128>}, {transform_indices = @transform_11, window_bounds = array<i64: 2, 128>}]} {
    %c0 = arith.constant 0 : index
    %c0_0 = arith.constant 0 : index
    %c0_1 = arith.constant 0 : index
    %c0_2 = arith.constant 0 : index
    %0 = vector.load %arg1[%c0, %c0_0, %c0_1, %c0_2] : memref<2x2x8x32xf32, #tpu.memory_space<vmem>>, vector<2x2x8x32xf32>
    %c0_3 = arith.constant 0 : index
    %c0_4 = arith.constant 0 : index
    %c0_5 = arith.constant 0 : index
    %1 = vector.load %arg2[%c0_3, %c0_4, %c0_5] : memref<2x2x8xf32, #tpu.memory_space<vmem>>, vector<2x2x8xf32>
    %2 = vector.shape_cast %0 : vector<2x2x8x32xf32> to vector<2x16x32xf32>
    %c0_6 = arith.constant 0 : index
    %c0_7 = arith.constant 0 : index
    %c0_8 = arith.constant 0 : index
    %3 = vector.load %arg3[%c0_6, %c0_7, %c0_8] : memref<2x32x64xf32, #tpu.memory_space<vmem>>, vector<2x32x64xf32>
    %cst = arith.constant dense<0.000000e+00> : vector<2x16x64xf32>
    %4 = tpu.matmul %2, %3, %cst {dimension_numbers = #tpu.dot_dimension_numbers<[2], [1], [1], [2], [0, 0, 0, 1, 1, 2], [0], [0]>} : vector<2x16x32xf32>, vector<2x32x64xf32>, vector<2x16x64xf32> -> vector<2x16x64xf32>
    %5 = vector.shape_cast %4 : vector<2x16x64xf32> to vector<2x2x8x64xf32>
    %c0_9 = arith.constant 0 : index
    %c0_10 = arith.constant 0 : index
    %6 = vector.load %arg4[%c0_9, %c0_10] : memref<2x64xf32, #tpu.memory_space<vmem>>, vector<2x64xf32>
    %c0_11 = arith.constant 0 : index
    %c0_12 = arith.constant 0 : index
    %c0_13 = arith.constant 0 : index
    %7 = vector.load %arg5[%c0_11, %c0_12, %c0_13] : memref<2x64x1xf32, #tpu.memory_space<vmem>>, vector<2x64x1xf32>
    %c0_14 = arith.constant 0 : index
    %c0_15 = arith.constant 0 : index
    %8 = vector.load %arg6[%c0_14, %c0_15] : memref<2x1xf32, #tpu.memory_space<vmem>>, vector<2x1xf32>
    %c0_16 = arith.constant 0 : index
    %c0_17 = arith.constant 0 : index
    %c0_18 = arith.constant 0 : index
    %9 = vector.load %arg7[%c0_16, %c0_17, %c0_18] : memref<2x32x32xf32, #tpu.memory_space<vmem>>, vector<2x32x32xf32>
    %c0_19 = arith.constant 0 : index
    %c0_20 = arith.constant 0 : index
    %10 = vector.load %arg8[%c0_19, %c0_20] : memref<2x32xf32, #tpu.memory_space<vmem>>, vector<2x32xf32>
    %cst_21 = arith.constant 0.000000e+00 : f32
    %11 = vector.broadcast %cst_21 : f32 to vector<2x32xf32>
    %12 = vector.extract_strided_slice %5 {offsets = [0, 0, 0, 0], sizes = [1, 2, 8, 64], strides = [1, 1, 1, 1]} : vector<2x2x8x64xf32> to vector<1x2x8x64xf32>
    %13 = vector.shape_cast %12 : vector<1x2x8x64xf32> to vector<2x8x64xf32>
    %14 = vector.extract_strided_slice %6 {offsets = [0, 0], sizes = [1, 64], strides = [1, 1]} : vector<2x64xf32> to vector<1x64xf32>
    %15 = vector.shape_cast %14 : vector<1x64xf32> to vector<64xf32>
    %16 = vector.shape_cast %15 : vector<64xf32> to vector<1x1x64xf32>
    %17 = vector.broadcast %16 : vector<1x1x64xf32> to vector<2x8x64xf32>
    %18 = arith.addf %13, %17 : vector<2x8x64xf32>
    %cst_22 = arith.constant 0.000000e+00 : f32
    %19 = vector.broadcast %cst_22 : f32 to vector<2x8x64xf32>
    %20 = arith.maximumf %18, %19 : vector<2x8x64xf32>
    %21 = vector.extract_strided_slice %7 {offsets = [0, 0, 0], sizes = [1, 64, 1], strides = [1, 1, 1]} : vector<2x64x1xf32> to vector<1x64x1xf32>
    %22 = vector.shape_cast %21 : vector<1x64x1xf32> to vector<64x1xf32>
    "tpu.trace_start"() <{level = 10 : i32, message = "bsm,mg->bsg"}> : () -> ()
    %cst_23 = arith.constant dense<0.000000e+00> : vector<2x8x1xf32>
    %23 = tpu.matmul %20, %22, %cst_23 {dimension_numbers = #tpu.dot_dimension_numbers<[2], [0], [0, 1], [1], [0, 0, 0, 1, 1, 1], [], []>} : vector<2x8x64xf32>, vector<64x1xf32>, vector<2x8x1xf32> -> vector<2x8x1xf32>
    "tpu.trace_stop"() : () -> ()
    %24 = vector.shape_cast %23 : vector<2x8x1xf32> to vector<2x8xf32>
    %25 = vector.extract_strided_slice %8 {offsets = [0, 0], sizes = [1, 1], strides = [1, 1]} : vector<2x1xf32> to vector<1x1xf32>
    %26 = vector.extract %25[0, 0] : f32 from vector<1x1xf32>
    %27 = vector.broadcast %26 : f32 to vector<2x8xf32>
    %28 = arith.addf %24, %27 : vector<2x8xf32>
    %29 = vector.extract_strided_slice %1 {offsets = [0, 0, 0], sizes = [1, 2, 8], strides = [1, 1, 1]} : vector<2x2x8xf32> to vector<1x2x8xf32>
    %30 = vector.shape_cast %29 : vector<1x2x8xf32> to vector<2x8xf32>
    %cst_24 = arith.constant 5.000000e-01 : f32
    %31 = vector.broadcast %cst_24 : f32 to vector<2x8xf32>
    %32 = arith.cmpf ogt, %30, %31 : vector<2x8xf32>
    %cst_25 = arith.constant -1.000000e+09 : f32
    %33 = vector.broadcast %cst_25 : f32 to vector<2x8xf32>
    %34 = arith.select %32, %33, %28 : vector<2x8xi1>, vector<2x8xf32>
    %cst_26 = arith.constant dense<0xFF800000> : vector<2xf32>
    %35 = vector.multi_reduction <maximumf>, %34, %cst_26 [1] : vector<2x8xf32> to vector<2xf32>
    %36 = vector.shape_cast %35 : vector<2xf32> to vector<2x1xf32>
    %37 = vector.broadcast %36 : vector<2x1xf32> to vector<2x8xf32>
    %38 = arith.subf %34, %37 : vector<2x8xf32>
    %39 = math.exp %38 : vector<2x8xf32>
    %cst_27 = arith.constant dense<0.000000e+00> : vector<2xf32>
    %40 = vector.multi_reduction <add>, %39, %cst_27 [1] : vector<2x8xf32> to vector<2xf32>
    %41 = vector.shape_cast %40 : vector<2xf32> to vector<2x1xf32>
    %42 = tpu.reciprocal %41 {approx = true} : vector<2x1xf32> -> vector<2x1xf32>
    %43 = vector.broadcast %42 : vector<2x1xf32> to vector<2x8xf32>
    %44 = arith.mulf %39, %43 : vector<2x8xf32>
    %45 = vector.shape_cast %44 : vector<2x8xf32> to vector<2x1x8xf32>
    %46 = vector.extract_strided_slice %0 {offsets = [0, 0, 0, 0], sizes = [1, 2, 8, 32], strides = [1, 1, 1, 1]} : vector<2x2x8x32xf32> to vector<1x2x8x32xf32>
    %47 = vector.shape_cast %46 : vector<1x2x8x32xf32> to vector<2x8x32xf32>
    "tpu.trace_start"() <{level = 10 : i32, message = "bqs,bsh->bqh"}> : () -> ()
    %cst_28 = arith.constant dense<0.000000e+00> : vector<2x1x32xf32>
    %48 = tpu.matmul %45, %47, %cst_28 {dimension_numbers = #tpu.dot_dimension_numbers<[2], [1], [1], [2], [0, 0, 0, 1, 1, 2], [0], [0]>} : vector<2x1x8xf32>, vector<2x8x32xf32>, vector<2x1x32xf32> -> vector<2x1x32xf32>
    "tpu.trace_stop"() : () -> ()
    %49 = vector.shape_cast %48 : vector<2x1x32xf32> to vector<2x32xf32>
    %50 = vector.extract_strided_slice %9 {offsets = [0, 0, 0], sizes = [1, 32, 32], strides = [1, 1, 1]} : vector<2x32x32xf32> to vector<1x32x32xf32>
    %51 = vector.shape_cast %50 : vector<1x32x32xf32> to vector<32x32xf32>
    %cst_29 = arith.constant dense<0.000000e+00> : vector<2x32xf32>
    %52 = tpu.matmul %49, %51, %cst_29 {dimension_numbers = #tpu.dot_dimension_numbers<[1], [0], [0], [1], [0, 0, 1, 1], [], []>} : vector<2x32xf32>, vector<32x32xf32>, vector<2x32xf32> -> vector<2x32xf32>
    %53 = arith.addf %11, %52 : vector<2x32xf32>
    %54 = vector.extract_strided_slice %10 {offsets = [0, 0], sizes = [1, 32], strides = [1, 1]} : vector<2x32xf32> to vector<1x32xf32>
    %55 = vector.shape_cast %54 : vector<1x32xf32> to vector<32xf32>
    %56 = vector.shape_cast %55 : vector<32xf32> to vector<1x32xf32>
    %57 = vector.broadcast %56 : vector<1x32xf32> to vector<2x32xf32>
    %58 = arith.addf %53, %57 : vector<2x32xf32>
    %59 = vector.extract_strided_slice %5 {offsets = [1, 0, 0, 0], sizes = [1, 2, 8, 64], strides = [1, 1, 1, 1]} : vector<2x2x8x64xf32> to vector<1x2x8x64xf32>
    %60 = vector.shape_cast %59 : vector<1x2x8x64xf32> to vector<2x8x64xf32>
    %61 = vector.extract_strided_slice %6 {offsets = [1, 0], sizes = [1, 64], strides = [1, 1]} : vector<2x64xf32> to vector<1x64xf32>
    %62 = vector.shape_cast %61 : vector<1x64xf32> to vector<64xf32>
    %63 = vector.shape_cast %62 : vector<64xf32> to vector<1x1x64xf32>
    %64 = vector.broadcast %63 : vector<1x1x64xf32> to vector<2x8x64xf32>
    %65 = arith.addf %60, %64 : vector<2x8x64xf32>
    %cst_30 = arith.constant 0.000000e+00 : f32
    %66 = vector.broadcast %cst_30 : f32 to vector<2x8x64xf32>
    %67 = arith.maximumf %65, %66 : vector<2x8x64xf32>
    %68 = vector.extract_strided_slice %7 {offsets = [1, 0, 0], sizes = [1, 64, 1], strides = [1, 1, 1]} : vector<2x64x1xf32> to vector<1x64x1xf32>
    %69 = vector.shape_cast %68 : vector<1x64x1xf32> to vector<64x1xf32>
    "tpu.trace_start"() <{level = 10 : i32, message = "bsm,mg->bsg"}> : () -> ()
    %cst_31 = arith.constant dense<0.000000e+00> : vector<2x8x1xf32>
    %70 = tpu.matmul %67, %69, %cst_31 {dimension_numbers = #tpu.dot_dimension_numbers<[2], [0], [0, 1], [1], [0, 0, 0, 1, 1, 1], [], []>} : vector<2x8x64xf32>, vector<64x1xf32>, vector<2x8x1xf32> -> vector<2x8x1xf32>
    "tpu.trace_stop"() : () -> ()
    %71 = vector.shape_cast %70 : vector<2x8x1xf32> to vector<2x8xf32>
    %72 = vector.extract_strided_slice %8 {offsets = [1, 0], sizes = [1, 1], strides = [1, 1]} : vector<2x1xf32> to vector<1x1xf32>
    %73 = vector.extract %72[0, 0] : f32 from vector<1x1xf32>
    %74 = vector.broadcast %73 : f32 to vector<2x8xf32>
    %75 = arith.addf %71, %74 : vector<2x8xf32>
    %76 = vector.extract_strided_slice %1 {offsets = [1, 0, 0], sizes = [1, 2, 8], strides = [1, 1, 1]} : vector<2x2x8xf32> to vector<1x2x8xf32>
    %77 = vector.shape_cast %76 : vector<1x2x8xf32> to vector<2x8xf32>
    %cst_32 = arith.constant 5.000000e-01 : f32
    %78 = vector.broadcast %cst_32 : f32 to vector<2x8xf32>
    %79 = arith.cmpf ogt, %77, %78 : vector<2x8xf32>
    %cst_33 = arith.constant -1.000000e+09 : f32
    %80 = vector.broadcast %cst_33 : f32 to vector<2x8xf32>
    %81 = arith.select %79, %80, %75 : vector<2x8xi1>, vector<2x8xf32>
    %cst_34 = arith.constant dense<0xFF800000> : vector<2xf32>
    %82 = vector.multi_reduction <maximumf>, %81, %cst_34 [1] : vector<2x8xf32> to vector<2xf32>
    %83 = vector.shape_cast %82 : vector<2xf32> to vector<2x1xf32>
    %84 = vector.broadcast %83 : vector<2x1xf32> to vector<2x8xf32>
    %85 = arith.subf %81, %84 : vector<2x8xf32>
    %86 = math.exp %85 : vector<2x8xf32>
    %cst_35 = arith.constant dense<0.000000e+00> : vector<2xf32>
    %87 = vector.multi_reduction <add>, %86, %cst_35 [1] : vector<2x8xf32> to vector<2xf32>
    %88 = vector.shape_cast %87 : vector<2xf32> to vector<2x1xf32>
    %89 = tpu.reciprocal %88 {approx = true} : vector<2x1xf32> -> vector<2x1xf32>
    %90 = vector.broadcast %89 : vector<2x1xf32> to vector<2x8xf32>
    %91 = arith.mulf %86, %90 : vector<2x8xf32>
    %92 = vector.shape_cast %91 : vector<2x8xf32> to vector<2x1x8xf32>
    %93 = vector.extract_strided_slice %0 {offsets = [1, 0, 0, 0], sizes = [1, 2, 8, 32], strides = [1, 1, 1, 1]} : vector<2x2x8x32xf32> to vector<1x2x8x32xf32>
    %94 = vector.shape_cast %93 : vector<1x2x8x32xf32> to vector<2x8x32xf32>
    "tpu.trace_start"() <{level = 10 : i32, message = "bqs,bsh->bqh"}> : () -> ()
    %cst_36 = arith.constant dense<0.000000e+00> : vector<2x1x32xf32>
    %95 = tpu.matmul %92, %94, %cst_36 {dimension_numbers = #tpu.dot_dimension_numbers<[2], [1], [1], [2], [0, 0, 0, 1, 1, 2], [0], [0]>} : vector<2x1x8xf32>, vector<2x8x32xf32>, vector<2x1x32xf32> -> vector<2x1x32xf32>
    "tpu.trace_stop"() : () -> ()
    %96 = vector.shape_cast %95 : vector<2x1x32xf32> to vector<2x32xf32>
    %97 = vector.extract_strided_slice %9 {offsets = [1, 0, 0], sizes = [1, 32, 32], strides = [1, 1, 1]} : vector<2x32x32xf32> to vector<1x32x32xf32>
    %98 = vector.shape_cast %97 : vector<1x32x32xf32> to vector<32x32xf32>
    %cst_37 = arith.constant dense<0.000000e+00> : vector<2x32xf32>
    %99 = tpu.matmul %96, %98, %cst_37 {dimension_numbers = #tpu.dot_dimension_numbers<[1], [0], [0], [1], [0, 0, 1, 1], [], []>} : vector<2x32xf32>, vector<32x32xf32>, vector<2x32xf32> -> vector<2x32xf32>
    %100 = arith.addf %58, %99 : vector<2x32xf32>
    %101 = vector.extract_strided_slice %10 {offsets = [1, 0], sizes = [1, 32], strides = [1, 1]} : vector<2x32xf32> to vector<1x32xf32>
    %102 = vector.shape_cast %101 : vector<1x32xf32> to vector<32xf32>
    %103 = vector.shape_cast %102 : vector<32xf32> to vector<1x32xf32>
    %104 = vector.broadcast %103 : vector<1x32xf32> to vector<2x32xf32>
    %105 = arith.addf %100, %104 : vector<2x32xf32>
    %cst_38 = arith.constant dense<0.000000e+00> : vector<2xf32>
    %106 = vector.multi_reduction <add>, %105, %cst_38 [1] : vector<2x32xf32> to vector<2xf32>
    %107 = vector.shape_cast %106 : vector<2xf32> to vector<2x1xf32>
    %cst_39 = arith.constant 3.200000e+01 : f32
    %108 = vector.broadcast %cst_39 : f32 to vector<2x1xf32>
    %109 = arith.divf %107, %108 : vector<2x1xf32>
    %110 = vector.broadcast %109 : vector<2x1xf32> to vector<2x32xf32>
    %111 = arith.subf %105, %110 : vector<2x32xf32>
    %112 = arith.mulf %111, %111 : vector<2x32xf32>
    %cst_40 = arith.constant dense<0.000000e+00> : vector<2xf32>
    %113 = vector.multi_reduction <add>, %112, %cst_40 [1] : vector<2x32xf32> to vector<2xf32>
    %114 = vector.shape_cast %113 : vector<2xf32> to vector<2x1xf32>
    %cst_41 = arith.constant 3.200000e+01 : f32
    %115 = vector.broadcast %cst_41 : f32 to vector<2x1xf32>
    %116 = arith.divf %114, %115 : vector<2x1xf32>
    %c0_42 = arith.constant 0 : index
    %c0_43 = arith.constant 0 : index
    %117 = vector.load %arg9[%c0_42, %c0_43] : memref<2x32xf32, #tpu.memory_space<vmem>>, vector<2x32xf32>
    %118 = vector.broadcast %109 : vector<2x1xf32> to vector<2x32xf32>
    %119 = arith.subf %105, %118 : vector<2x32xf32>
    %cst_44 = arith.constant 9.99999997E-7 : f32
    %120 = vector.broadcast %cst_44 : f32 to vector<2x1xf32>
    %121 = arith.addf %116, %120 : vector<2x1xf32>
    %122 = math.rsqrt %121 : vector<2x1xf32>
    %123 = vector.broadcast %122 : vector<2x1xf32> to vector<2x32xf32>
    %124 = arith.mulf %119, %123 : vector<2x32xf32>
    %125 = vector.extract_strided_slice %117 {offsets = [0, 0], sizes = [1, 32], strides = [1, 1]} : vector<2x32xf32> to vector<1x32xf32>
    %126 = vector.broadcast %125 : vector<1x32xf32> to vector<2x32xf32>
    %127 = arith.mulf %124, %126 : vector<2x32xf32>
    %128 = vector.extract_strided_slice %117 {offsets = [1, 0], sizes = [1, 32], strides = [1, 1]} : vector<2x32xf32> to vector<1x32xf32>
    %129 = vector.broadcast %128 : vector<1x32xf32> to vector<2x32xf32>
    %130 = arith.addf %127, %129 : vector<2x32xf32>
    %c0_45 = arith.constant 0 : index
    %c0_46 = arith.constant 0 : index
    %131 = vector.load %arg10[%c0_45, %c0_46] : memref<32x128xf32, #tpu.memory_space<vmem>>, vector<32x128xf32>
    %cst_47 = arith.constant dense<0.000000e+00> : vector<2x128xf32>
    %132 = tpu.matmul %130, %131, %cst_47 {dimension_numbers = #tpu.dot_dimension_numbers<[1], [0], [0], [1], [0, 0, 1, 1], [], []>} : vector<2x32xf32>, vector<32x128xf32>, vector<2x128xf32> -> vector<2x128xf32>
    %c0_48 = arith.constant 0 : index
    %c0_49 = arith.constant 0 : index
    %133 = vector.load %arg11[%c0_48, %c0_49] : memref<1x128xf32, #tpu.memory_space<vmem>>, vector<1x128xf32>
    %134 = vector.broadcast %133 : vector<1x128xf32> to vector<2x128xf32>
    %135 = arith.addf %132, %134 : vector<2x128xf32>
    %c0_50 = arith.constant 0 : index
    %c0_51 = arith.constant 0 : index
    %136 = vector.load %arg12[%c0_50, %c0_51] : memref<2x128xf32, #tpu.memory_space<vmem>>, vector<2x128xf32>
    tpu.vector_store %arg12[%c0_50, %c0_51], %135 {strides = array<i32>} : memref<2x128xf32, #tpu.memory_space<vmem>>, vector<2x128xf32>,
    return
  }
  func.func @transform_0(%arg0: i32) -> (i32, i32, i32, i32) {
    %c0_i32 = arith.constant 0 : i32
    %c0_i32_0 = arith.constant 0 : i32
    %c0_i32_1 = arith.constant 0 : i32
    %c0_i32_2 = arith.constant 0 : i32
    return %c0_i32, %arg0, %c0_i32_0, %c0_i32_1 : i32, i32, i32, i32
  }
  func.func @transform_1(%arg0: i32) -> (i32, i32, i32) {
    %c0_i32 = arith.constant 0 : i32
    %c0_i32_0 = arith.constant 0 : i32
    %c0_i32_1 = arith.constant 0 : i32
    return %c0_i32, %arg0, %c0_i32_0 : i32, i32, i32
  }
  func.func @transform_2(%arg0: i32) -> (i32, i32, i32) {
    %c0_i32 = arith.constant 0 : i32
    %c0_i32_0 = arith.constant 0 : i32
    %c0_i32_1 = arith.constant 0 : i32
    %c0_i32_2 = arith.constant 0 : i32
    return %c0_i32, %c0_i32_0, %c0_i32_1 : i32, i32, i32
  }
  func.func @transform_3(%arg0: i32) -> (i32, i32) {
    %c0_i32 = arith.constant 0 : i32
    %c0_i32_0 = arith.constant 0 : i32
    %c0_i32_1 = arith.constant 0 : i32
    return %c0_i32, %c0_i32_0 : i32, i32
  }
  func.func @transform_4(%arg0: i32) -> (i32, i32, i32) {
    %c0_i32 = arith.constant 0 : i32
    %c0_i32_0 = arith.constant 0 : i32
    %c0_i32_1 = arith.constant 0 : i32
    %c0_i32_2 = arith.constant 0 : i32
    return %c0_i32, %c0_i32_0, %c0_i32_1 : i32, i32, i32
  }
  func.func @transform_5(%arg0: i32) -> (i32, i32) {
    %c0_i32 = arith.constant 0 : i32
    %c0_i32_0 = arith.constant 0 : i32
    %c0_i32_1 = arith.constant 0 : i32
    return %c0_i32, %c0_i32_0 : i32, i32
  }
  func.func @transform_6(%arg0: i32) -> (i32, i32, i32) {
    %c0_i32 = arith.constant 0 : i32
    %c0_i32_0 = arith.constant 0 : i32
    %c0_i32_1 = arith.constant 0 : i32
    %c0_i32_2 = arith.constant 0 : i32
    return %c0_i32, %c0_i32_0, %c0_i32_1 : i32, i32, i32
  }
  func.func @transform_7(%arg0: i32) -> (i32, i32) {
    %c0_i32 = arith.constant 0 : i32
    %c0_i32_0 = arith.constant 0 : i32
    %c0_i32_1 = arith.constant 0 : i32
    return %c0_i32, %c0_i32_0 : i32, i32
  }
  func.func @transform_8(%arg0: i32) -> (i32, i32) {
    %c0_i32 = arith.constant 0 : i32
    %c0_i32_0 = arith.constant 0 : i32
    %c0_i32_1 = arith.constant 0 : i32
    return %c0_i32, %c0_i32_0 : i32, i32
  }
  func.func @transform_9(%arg0: i32) -> (i32, i32) {
    %c0_i32 = arith.constant 0 : i32
    %c0_i32_0 = arith.constant 0 : i32
    %c0_i32_1 = arith.constant 0 : i32
    return %c0_i32, %c0_i32_0 : i32, i32
  }
  func.func @transform_10(%arg0: i32) -> (i32, i32) {
    %c0_i32 = arith.constant 0 : i32
    %c0_i32_0 = arith.constant 0 : i32
    %c0_i32_1 = arith.constant 0 : i32
    return %c0_i32, %c0_i32_0 : i32, i32
  }
  func.func @transform_11(%arg0: i32) -> (i32, i32) {
    %c0_i32 = arith.constant 0 : i32
    %c0_i32_0 = arith.constant 0 : i32
    return %arg0, %c0_i32 : i32, i32
  }
}

</mosaic_0001>

<llo_original>
// kernel: tpu_custom_call.1
$region0: #{tpu_custom_call.1}
  #allocation0 [shape = 'u32[]', space=smem, size = 0x4, offset = 0x4, fixed_abs, tag = 'smem constant byte address 0x4 - core index']
  #allocation1 [shape = 'u32[144,128]{1,0:T(1,128)}', space=vmem, size = 0x12000, scoped, tag = 'internal scratch']
  %s0 = inlined_call_operand.hbm [shape: f32[2,2,8,32], index: 0, kind: input, shape index: {}]
  %s1 = inlined_call_operand.hbm [shape: f32[2,2,8], index: 1, kind: input, shape index: {}]
  %s2 = inlined_call_operand.vmem [shape: f32[2,32,64], index: 2, kind: input, shape index: {}]
  %s3 = inlined_call_operand.hbm [shape: f32[2,64], index: 3, kind: input, shape index: {}]
  %s4 = inlined_call_operand.vmem [shape: f32[2,64,1], index: 4, kind: input, shape index: {}]
  %s5 = inlined_call_operand.vmem [shape: f32[2,1], index: 5, kind: input, shape index: {}]
  %s6 = inlined_call_operand.vmem [shape: f32[2,32,32], index: 6, kind: input, shape index: {}]
  %s7 = inlined_call_operand.hbm [shape: f32[2,32], index: 7, kind: input, shape index: {}]
  %s8 = inlined_call_operand.vmem [shape: f32[2,32], index: 8, kind: input, shape index: {}]
  %s9 = inlined_call_operand.vmem [shape: f32[32,128], index: 9, kind: input, shape index: {}]
  %s10 = inlined_call_operand.vmem [shape: f32[1,128], index: 10, kind: input, shape index: {}]
  %s11 = inlined_call_operand.hbm [shape: f32[2,128], index: 11, kind: output, shape index: {}]
  %s12 = sld [smem:[#allocation0]]
  $region70: #{tpu_custom_call.1} parent=0
    _
  %s14 = ssub.s32 1, %s12
  %s15 = scalar_select 0, %s14, %s12
  $region1: #{tpu_custom_call.1} parent=0
    #allocation2 [shape = 'u8[16384]{0}', space=vmem, size = 0x4000, scoped, tag = 'input window, operand 0, single buffered']
    #allocation3 [shape = 's32[1]{0}', space=sflag, size = 0x4, scoped, tag = 'scoped memory for tpu_custom_call.1']
    #allocation4 [shape = 's32[1]{0}', space=sflag, size = 0x4, scoped, tag = 'scoped memory for tpu_custom_call.1']
    #allocation5 [shape = 'u8[2048]{0}', space=vmem, size = 0x800, scoped, tag = 'input window, operand 1, single buffered']
    #allocation6 [shape = 's32[1]{0}', space=sflag, size = 0x4, scoped, tag = 'scoped memory for tpu_custom_call.1']
    #allocation7 [shape = 'u8[1024]{0}', space=vmem, size = 0x400, scoped, tag = 'input window, operand 3, single buffered']
    #allocation8 [shape = 'u8[1024]{0}', space=vmem, size = 0x400, scoped, tag = 'input window, operand 7, single buffered']
    #allocation9 [shape = 's32[1]{0}', space=sflag, size = 0x4, scoped, tag = 'scoped memory for tpu_custom_call.1']
    #allocation10 [shape = 'u8[1024]{0}', space=vmem, size = 0x400, scoped, tag = 'output window, operand 0, single buffered']
    %16 = vsyncpa [#allocation3], 0
    %17 = vsyncpa [#allocation6], 0
    %18 = vsyncpa [#allocation9], 0
    %19 = vsyncpa [#allocation4], 0
    // Predicated region
    $region2: #{tpu_custom_call.1} parent=1 // pred_check
      _
    $region3: #{tpu_custom_call.1} parent=1 // pred_check_branch
      %21 = sbr.rel (0) target = $region5
    $region4: #{tpu_custom_call.1} parent=1 // pred_region
      %s23 = ssub.s32 512, 512
      %24 = vsyncadd [#allocation3], %s23
      %s25 = sshll.u32 [#allocation2], 4
      %s26 = int_to_ptr.vmem [resolvable:$true] %s25
      %31 = dma.hbm_to_vmem [thread:$0]  %s0, 512, %s26, [#allocation3], 128, 128, 8
    $region5: #{tpu_custom_call.1} parent=1 // pred_fallthru
      _
    // Predicated region
    $region6: #{tpu_custom_call.1} parent=1 // pred_check
      _
    $region7: #{tpu_custom_call.1} parent=1 // pred_check_branch
      %33 = sbr.rel (0) target = $region9
    $region8: #{tpu_custom_call.1} parent=1 // pred_region
      %s35 = ssub.s32 64, 64
      %36 = vsyncadd [#allocation6], %s35
      %s37 = sshll.u32 [#allocation5], 4
      %s38 = int_to_ptr.vmem [resolvable:$true] %s37
      %43 = dma.hbm_to_vmem [thread:$0]  %s1, 64, %s38, [#allocation6], 32, 32, 2
    $region9: #{tpu_custom_call.1} parent=1 // pred_fallthru
      _
    // Predicated region
    $region10: #{tpu_custom_call.1} parent=1 // pred_check
      _
    $region11: #{tpu_custom_call.1} parent=1 // pred_check_branch
      %45 = sbr.rel (0) target = $region13
    $region12: #{tpu_custom_call.1} parent=1 // pred_region
      _
    $region13: #{tpu_custom_call.1} parent=1 // pred_fallthru
      _
    // Predicated region
    $region14: #{tpu_custom_call.1} parent=1 // pred_check
      _
    $region15: #{tpu_custom_call.1} parent=1 // pred_check_branch
      %47 = sbr.rel (0) target = $region17
    $region16: #{tpu_custom_call.1} parent=1 // pred_region
      %s49 = ssub.s32 32, 32
      %50 = vsyncadd [#allocation6], %s49
      %s52 = sshll.u32 [#allocation7], 4
      %s53 = int_to_ptr.vmem [resolvable:$true] %s52
      %55 = dma.hbm_to_vmem [thread:$0]  %s3, 32, %s53, [#allocation6]
    $region17: #{tpu_custom_call.1} parent=1 // pred_fallthru
      _
    // Predicated region
    $region18: #{tpu_custom_call.1} parent=1 // pred_check
      _
    $region19: #{tpu_custom_call.1} parent=1 // pred_check_branch
      %57 = sbr.rel (0) target = $region21
    $region20: #{tpu_custom_call.1} parent=1 // pred_region
      _
    $region21: #{tpu_custom_call.1} parent=1 // pred_fallthru
      _
    // Predicated region
    $region22: #{tpu_custom_call.1} parent=1 // pred_check
      _
    $region23: #{tpu_custom_call.1} parent=1 // pred_check_branch
      %59 = sbr.rel (0) target = $region25
    $region24: #{tpu_custom_call.1} parent=1 // pred_region
      _
    $region25: #{tpu_custom_call.1} parent=1 // pred_fallthru
      _
    // Predicated region
    $region26: #{tpu_custom_call.1} parent=1 // pred_check
      _
    $region27: #{tpu_custom_call.1} parent=1 // pred_check_branch
      %61 = sbr.rel (0) target = $region29
    $region28: #{tpu_custom_call.1} parent=1 // pred_region
      _
    $region29: #{tpu_custom_call.1} parent=1 // pred_fallthru
      _
    // Predicated region
    $region30: #{tpu_custom_call.1} parent=1 // pred_check
      _
    $region31: #{tpu_custom_call.1} parent=1 // pred_check_branch
      %63 = sbr.rel (0) target = $region33
    $region32: #{tpu_custom_call.1} parent=1 // pred_region
      %s65 = ssub.s32 32, 32
      %66 = vsyncadd [#allocation9], %s65
      %s68 = sshll.u32 [#allocation8], 4
      %s69 = int_to_ptr.vmem [resolvable:$true] %s68
      %71 = dma.hbm_to_vmem [thread:$0]  %s7, 32, %s69, [#allocation9]
    $region33: #{tpu_custom_call.1} parent=1 // pred_fallthru
      _
    // Predicated region
    $region34: #{tpu_custom_call.1} parent=1 // pred_check
      _
    $region35: #{tpu_custom_call.1} parent=1 // pred_check_branch
      %73 = sbr.rel (0) target = $region37
    $region36: #{tpu_custom_call.1} parent=1 // pred_region
      _
    $region37: #{tpu_custom_call.1} parent=1 // pred_fallthru
      _
    // Predicated region
    $region38: #{tpu_custom_call.1} parent=1 // pred_check
      _
    $region39: #{tpu_custom_call.1} parent=1 // pred_check_branch
      %75 = sbr.rel (0) target = $region41
    $region40: #{tpu_custom_call.1} parent=1 // pred_region
      _
    $region41: #{tpu_custom_call.1} parent=1 // pred_fallthru
      _
    // Predicated region
    $region42: #{tpu_custom_call.1} parent=1 // pred_check
      _
    $region43: #{tpu_custom_call.1} parent=1 // pred_check_branch
      %77 = sbr.rel (0) target = $region45
    $region44: #{tpu_custom_call.1} parent=1 // pred_region
      _
    $region45: #{tpu_custom_call.1} parent=1 // pred_fallthru
      _
    // Predicated region
    $region46: #{tpu_custom_call.1} parent=1 // pred_check
      _
    $region47: #{tpu_custom_call.1} parent=1 // pred_check_branch
      %79 = sbr.rel (0) target = $region49
    $region48: #{tpu_custom_call.1} parent=1 // pred_region
      %80 = dma.done [#allocation3], 512
    $region49: #{tpu_custom_call.1} parent=1 // pred_fallthru
      _
    // Predicated region
    $region50: #{tpu_custom_call.1} parent=1 // pred_check
      _
    $region51: #{tpu_custom_call.1} parent=1 // pred_check_branch
      %82 = sbr.rel (0) target = $region53
    $region52: #{tpu_custom_call.1} parent=1 // pred_region
      %83 = dma.done [#allocation6], 64
    $region53: #{tpu_custom_call.1} parent=1 // pred_fallthru
      _
    // Predicated region
    $region54: #{tpu_custom_call.1} parent=1 // pred_check
      _
    $region55: #{tpu_custom_call.1} parent=1 // pred_check_branch
      %85 = sbr.rel (0) target = $region57
    $region56: #{tpu_custom_call.1} parent=1 // pred_region
      %86 = dma.done [#allocation6], 32
    $region57: #{tpu_custom_call.1} parent=1 // pred_fallthru
      _
    // Predicated region
    $region58: #{tpu_custom_call.1} parent=1 // pred_check
      _
    $region59: #{tpu_custom_call.1} parent=1 // pred_check_branch
      %88 = sbr.rel (0) target = $region61
    $region60: #{tpu_custom_call.1} parent=1 // pred_region
      %89 = dma.done [#allocation9], 32
    $region61: #{tpu_custom_call.1} parent=1 // pred_fallthru
      _
    %v90 = vld [vmem:[#allocation2] sm:$0xff]
    %v91 = vld [vmem:[#allocation2 + $0x8] sm:$0xff]
    %v92 = vld [vmem:[#allocation2 + $0x10] sm:$0xff]
    %v93 = vld [vmem:[#allocation2 + $0x18] sm:$0xff]
    %v94 = vld [vmem:[#allocation5] sm:$0x3]
    %v95 = vld [vmem:[#allocation5 + $0x2] sm:$0x3]
    %v96 = vld [vmem:[%s2] sm:$0xff]
    %v97 = vld [vmem:[%s2 + $0x8] sm:$0xff]
    %v98 = vld [vmem:[%s2 + $0x10] sm:$0xff]
    %v99 = vld [vmem:[%s2 + $0x18] sm:$0xff]
    %v100 = vld [vmem:[%s2 + $0x20] sm:$0xff]
    %v101 = vld [vmem:[%s2 + $0x28] sm:$0xff]
    %v102 = vld [vmem:[%s2 + $0x30] sm:$0xff]
    %v103 = vld [vmem:[%s2 + $0x38] sm:$0xff]
    %vm104 = vcmask 261120
    %v106 = vsel %vm104, %v90, 0
    %v109 = vsel %vm104, %v91, 0
    %111 = vmatprep.subr.mxu0 0.0
    %112 = vmatpush1.msra.mxu0 %v96
    %113 = vmatprep.subr.mxu0 0.0
    %114 = vmatpush1.msra.mxu0 %v97
    %115 = vmatprep.subr.mxu0 0.0
    %116 = vmatpush1.msra.mxu0 %v98
    %117 = vmatprep.subr.mxu0 0.0
    %118 = vmatpush1.msra.mxu0 %v99
    %119 = vmatprep.subr.mxu0 0.0
    %120 = vmatpush1.msra.mxu0 0.0
    %121 = vmatprep.subr.mxu0 0.0
    %122 = vmatpush1.msra.mxu0 0.0
    %123 = vmatprep.subr.mxu0 0.0
    %124 = vmatpush1.msra.mxu0 0.0
    %125 = vmatprep.subr.mxu0 0.0
    %126 = vmatpush1.msra.mxu0 0.0
    %127 = vmatprep.subr.mxu0 0.0
    %128 = vmatpush1.msra.mxu0 0.0
    %129 = vmatprep.subr.mxu0 0.0
    %130 = vmatpush1.msra.mxu0 0.0
    %131 = vmatprep.subr.mxu0 0.0
    %132 = vmatpush1.msra.mxu0 0.0
    %133 = vmatprep.subr.mxu0 0.0
    %134 = vmatpush1.msra.mxu0 0.0
    %135 = vmatprep.subr.mxu0 0.0
    %136 = vmatpush1.msra.mxu0 0.0
    %137 = vmatprep.subr.mxu0 0.0
    %138 = vmatpush1.msra.mxu0 0.0
    %139 = vmatprep.subr.mxu0 0.0
    %140 = vmatpush1.msra.mxu0 0.0
    %141 = vmatprep.subr.mxu0 0.0
    %142 = vmatpush1.msra.mxu0 0.0
    %143 = vmatprep.subr.mxu0 0.0
    %144 = vmatpush1.msra.mxu0 0.0
    %145 = vmatprep.subr.mxu0 0.0
    %146 = vmatpush1.msra.mxu0 0.0
    %147 = vmatprep.subr.mxu0 0.0
    %148 = vmatpush1.msra.mxu0 0.0
    %149 = vmatprep.subr.mxu0 0.0
    %150 = vmatpush1.msra.mxu0 0.0
    %151 = vmatprep.subr.mxu0 0.0
    %152 = vmatpush1.msra.mxu0 0.0
    %153 = vmatprep.subr.mxu0 0.0
    %154 = vmatpush1.msra.mxu0 0.0
    %155 = vmatprep.subr.mxu0 0.0
    %156 = vmatpush1.msra.mxu0 0.0
    %157 = vmatprep.subr.mxu0 0.0
    %158 = vmatpush1.msra.mxu0 0.0
    %159 = vmatprep.subr.mxu0 0.0
    %160 = vmatpush1.msra.mxu0 0.0
    %161 = vmatprep.subr.mxu0 0.0
    %162 = vmatpush1.msra.mxu0 0.0
    %163 = vmatprep.subr.mxu0 0.0
    %164 = vmatpush1.msra.mxu0 0.0
    %165 = vmatprep.subr.mxu0 0.0
    %166 = vmatpush1.msra.mxu0 0.0
    %167 = vmatprep.subr.mxu0 0.0
    %168 = vmatpush1.msra.mxu0 0.0
    %169 = vmatprep.subr.mxu0 0.0
    %170 = vmatpush1.msra.mxu0 0.0
    %171 = vmatprep.subr.mxu0 0.0
    %172 = vmatpush1.msra.mxu0 0.0
    %173 = vmatprep.subr.mxu0 0.0
    %174 = vmatpush1.msra.mxu0 0.0
    %175 = vmatprep.mubr.f32.mxu0 0.0
    %176 = vmatmul.mubr.f32.gmra.mrb[0].mxu0 %v106
    %v177 = vpop.f32.mrb[0].mxu0
    %v178 = vadd.f32 0.0, %v177
    %v179 = vpop.f32.mrb[0].mxu0
    %180 = vmatprep.mubr.f32.mxu0 0.0
    %181 = vmatmul.mubr.f32.gmra.mrb[0].mxu0 %v109
    %v182 = vpop.f32.mrb[0].mxu0
    %v183 = vadd.f32 0.0, %v182
    %v184 = vpop.f32.mrb[0].mxu0
    %185 = vdwg.mxu0
    %v187 = vsel %vm104, %v92, 0
    %v190 = vsel %vm104, %v93, 0
    %192 = vmatprep.subr.mxu0 0.0
    %193 = vmatpush1.msra.mxu0 %v100
    %194 = vmatprep.subr.mxu0 0.0
    %195 = vmatpush1.msra.mxu0 %v101
    %196 = vmatprep.subr.mxu0 0.0
    %197 = vmatpush1.msra.mxu0 %v102
    %198 = vmatprep.subr.mxu0 0.0
    %199 = vmatpush1.msra.mxu0 %v103
    %200 = vmatprep.subr.mxu0 0.0
    %201 = vmatpush1.msra.mxu0 0.0
    %202 = vmatprep.subr.mxu0 0.0
    %203 = vmatpush1.msra.mxu0 0.0
    %204 = vmatprep.subr.mxu0 0.0
    %205 = vmatpush1.msra.mxu0 0.0
    %206 = vmatprep.subr.mxu0 0.0
    %207 = vmatpush1.msra.mxu0 0.0
    %208 = vmatprep.subr.mxu0 0.0
    %209 = vmatpush1.msra.mxu0 0.0
    %210 = vmatprep.subr.mxu0 0.0
    %211 = vmatpush1.msra.mxu0 0.0
    %212 = vmatprep.subr.mxu0 0.0
    %213 = vmatpush1.msra.mxu0 0.0
    %214 = vmatprep.subr.mxu0 0.0
    %215 = vmatpush1.msra.mxu0 0.0
    %216 = vmatprep.subr.mxu0 0.0
    %217 = vmatpush1.msra.mxu0 0.0
    %218 = vmatprep.subr.mxu0 0.0
    %219 = vmatpush1.msra.mxu0 0.0
    %220 = vmatprep.subr.mxu0 0.0
    %221 = vmatpush1.msra.mxu0 0.0
    %222 = vmatprep.subr.mxu0 0.0
    %223 = vmatpush1.msra.mxu0 0.0
    %224 = vmatprep.subr.mxu0 0.0
    %225 = vmatpush1.msra.mxu0 0.0
    %226 = vmatprep.subr.mxu0 0.0
    %227 = vmatpush1.msra.mxu0 0.0
    %228 = vmatprep.subr.mxu0 0.0
    %229 = vmatpush1.msra.mxu0 0.0
    %230 = vmatprep.subr.mxu0 0.0
    %231 = vmatpush1.msra.mxu0 0.0
    %232 = vmatprep.subr.mxu0 0.0
    %233 = vmatpush1.msra.mxu0 0.0
    %234 = vmatprep.subr.mxu0 0.0
    %235 = vmatpush1.msra.mxu0 0.0
    %236 = vmatprep.subr.mxu0 0.0
    %237 = vmatpush1.msra.mxu0 0.0
    %238 = vmatprep.subr.mxu0 0.0
    %239 = vmatpush1.msra.mxu0 0.0
    %240 = vmatprep.subr.mxu0 0.0
    %241 = vmatpush1.msra.mxu0 0.0
    %242 = vmatprep.subr.mxu0 0.0
    %243 = vmatpush1.msra.mxu0 0.0
    %244 = vmatprep.subr.mxu0 0.0
    %245 = vmatpush1.msra.mxu0 0.0
    %246 = vmatprep.subr.mxu0 0.0
    %247 = vmatpush1.msra.mxu0 0.0
    %248 = vmatprep.subr.mxu0 0.0
    %249 = vmatpush1.msra.mxu0 0.0
    %250 = vmatprep.subr.mxu0 0.0
    %251 = vmatpush1.msra.mxu0 0.0
    %252 = vmatprep.subr.mxu0 0.0
    %253 = vmatpush1.msra.mxu0 0.0
    %254 = vmatprep.subr.mxu0 0.0
    %255 = vmatpush1.msra.mxu0 0.0
    %256 = vmatprep.mubr.f32.mxu0 0.0
    %257 = vmatmul.mubr.f32.gmra.mrb[0].mxu0 %v187
    %v258 = vpop.f32.mrb[0].mxu0
    %v259 = vadd.f32 0.0, %v258
    %v260 = vpop.f32.mrb[0].mxu0
    %261 = vmatprep.mubr.f32.mxu0 0.0
    %262 = vmatmul.mubr.f32.gmra.mrb[0].mxu0 %v190
    %v263 = vpop.f32.mrb[0].mxu0
    %v264 = vadd.f32 0.0, %v263
    %v265 = vpop.f32.mrb[0].mxu0
    %266 = vdwg.mxu0
    %v267 = vld [vmem:[#allocation7] sm:$0x3]
    %v268 = vld [vmem:[%s4] sm:$0xff]
    %v269 = vld [vmem:[%s4 + $0x8] sm:$0xff]
    %v270 = vld [vmem:[%s4 + $0x10] sm:$0xff]
    %v271 = vld [vmem:[%s4 + $0x18] sm:$0xff]
    %v272 = vld [vmem:[%s4 + $0x20] sm:$0xff]
    %v273 = vld [vmem:[%s4 + $0x28] sm:$0xff]
    %v274 = vld [vmem:[%s4 + $0x30] sm:$0xff]
    %v275 = vld [vmem:[%s4 + $0x38] sm:$0xff]
    %v276 = vld [vmem:[%s4 + $0x40] sm:$0xff]
    %v277 = vld [vmem:[%s4 + $0x48] sm:$0xff]
    %v278 = vld [vmem:[%s4 + $0x50] sm:$0xff]
    %v279 = vld [vmem:[%s4 + $0x58] sm:$0xff]
    %v280 = vld [vmem:[%s4 + $0x60] sm:$0xff]
    %v281 = vld [vmem:[%s4 + $0x68] sm:$0xff]
    %v282 = vld [vmem:[%s4 + $0x70] sm:$0xff]
    %v283 = vld [vmem:[%s4 + $0x78] sm:$0xff]
    %v284 = vld [vmem:[%s5] sm:$0x3]
    %v285 = vld [vmem:[%s6] sm:$0xff]
    %v286 = vld [vmem:[%s6 + $0x8] sm:$0xff]
    %v287 = vld [vmem:[%s6 + $0x10] sm:$0xff]
    %v288 = vld [vmem:[%s6 + $0x18] sm:$0xff]
    %v289 = vld [vmem:[%s6 + $0x20] sm:$0xff]
    %v290 = vld [vmem:[%s6 + $0x28] sm:$0xff]
    %v291 = vld [vmem:[%s6 + $0x30] sm:$0xff]
    %v292 = vld [vmem:[%s6 + $0x38] sm:$0xff]
    %v293 = vld [vmem:[#allocation8] sm:$0x3]
    %v294 = vlaneseq
    %v295 = vshrl.u32 %v294, 7
    %v296 = vsub.s32 0, %v295
    %v297 = vrot.slane %v267, %v296
    %v298 = vadd.f32 %v178, %v297
    %v299 = vadd.f32 %v183, %v297
    %v300 = vmax.f32 %v298, 0.0
    %v301 = vmax.f32 %v299, 0.0
    %vm302 = vcmask 523264
    %v304 = vsel %vm302, %v300, 0
    %v307 = vsel %vm302, %v301, 0
    %309 = vmatprep.subr.mxu0 0.0
    %310 = vmatpush1.msra.mxu0 %v268
    %311 = vmatprep.subr.mxu0 0.0
    %312 = vmatpush1.msra.mxu0 %v269
    %313 = vmatprep.subr.mxu0 0.0
    %314 = vmatpush1.msra.mxu0 %v270
    %315 = vmatprep.subr.mxu0 0.0
    %316 = vmatpush1.msra.mxu0 %v271
    %317 = vmatprep.subr.mxu0 0.0
    %318 = vmatpush1.msra.mxu0 %v272
    %319 = vmatprep.subr.mxu0 0.0
    %320 = vmatpush1.msra.mxu0 %v273
    %321 = vmatprep.subr.mxu0 0.0
    %322 = vmatpush1.msra.mxu0 %v274
    %323 = vmatprep.subr.mxu0 0.0
    %324 = vmatpush1.msra.mxu0 %v275
    %325 = vmatprep.subr.mxu0 0.0
    %326 = vmatpush1.msra.mxu0 0.0
    %327 = vmatprep.subr.mxu0 0.0
    %328 = vmatpush1.msra.mxu0 0.0
    %329 = vmatprep.subr.mxu0 0.0
    %330 = vmatpush1.msra.mxu0 0.0
    %331 = vmatprep.subr.mxu0 0.0
    %332 = vmatpush1.msra.mxu0 0.0
    %333 = vmatprep.subr.mxu0 0.0
    %334 = vmatpush1.msra.mxu0 0.0
    %335 = vmatprep.subr.mxu0 0.0
    %336 = vmatpush1.msra.mxu0 0.0
    %337 = vmatprep.subr.mxu0 0.0
    %338 = vmatpush1.msra.mxu0 0.0
    %339 = vmatprep.subr.mxu0 0.0
    %340 = vmatpush1.msra.mxu0 0.0
    %341 = vmatprep.subr.mxu0 0.0
    %342 = vmatpush1.msra.mxu0 0.0
    %343 = vmatprep.subr.mxu0 0.0
    %344 = vmatpush1.msra.mxu0 0.0
    %345 = vmatprep.subr.mxu0 0.0
    %346 = vmatpush1.msra.mxu0 0.0
    %347 = vmatprep.subr.mxu0 0.0
    %348 = vmatpush1.msra.mxu0 0.0
    %349 = vmatprep.subr.mxu0 0.0
    %350 = vmatpush1.msra.mxu0 0.0
    %351 = vmatprep.subr.mxu0 0.0
    %352 = vmatpush1.msra.mxu0 0.0
    %353 = vmatprep.subr.mxu0 0.0
    %354 = vmatpush1.msra.mxu0 0.0
    %355 = vmatprep.subr.mxu0 0.0
    %356 = vmatpush1.msra.mxu0 0.0
    %357 = vmatprep.subr.mxu0 0.0
    %358 = vmatpush1.msra.mxu0 0.0
    %359 = vmatprep.subr.mxu0 0.0
    %360 = vmatpush1.msra.mxu0 0.0
    %361 = vmatprep.subr.mxu0 0.0
    %362 = vmatpush1.msra.mxu0 0.0
    %363 = vmatprep.subr.mxu0 0.0
    %364 = vmatpush1.msra.mxu0 0.0
    %365 = vmatprep.subr.mxu0 0.0
    %366 = vmatpush1.msra.mxu0 0.0
    %367 = vmatprep.subr.mxu0 0.0
    %368 = vmatpush1.msra.mxu0 0.0
    %369 = vmatprep.subr.mxu0 0.0
    %370 = vmatpush1.msra.mxu0 0.0
    %371 = vmatprep.subr.mxu0 0.0
    %372 = vmatpush1.msra.mxu0 0.0
    %373 = vmatprep.mubr.f32.mxu0 0.0
    %374 = vmatmul.mubr.f32.gmra.mrb[0].mxu0 %v304
    %v375 = vpop.f32.mrb[0].mxu0
    %v376 = vadd.f32 0.0, %v375
    %v377 = vpop.f32.mrb[0].mxu0
    %378 = vmatprep.mubr.f32.mxu0 0.0
    %379 = vmatmul.mubr.f32.gmra.mrb[0].mxu0 %v307
    %v380 = vpop.f32.mrb[0].mxu0
    %v381 = vadd.f32 0.0, %v380
    %v382 = vpop.f32.mrb[0].mxu0
    %383 = vdwg.mxu0
    %s384 = vtos %v284
    %v385 = vstv %s384
    %v386 = vadd.f32 %v376, %v385
    %v387 = vadd.f32 %v381, %v385
    %vm388 = vcmp.gt.f32.partialorder %v94, 0.5
    %391 = vset.pattern.permute.xlu0 0
    %392 = vperm.xlu0 %391, %v386
    %v393 = vpop.permute.xlu0 %392
    %394 = vset.pattern.permute.xlu0 0
    %395 = vperm.xlu0 %394, %v387
    %v396 = vpop.permute.xlu0 %395
    %v397 = vlaneseq
    %v398 = vand.u32 %v397, 127
    %v399 = vlaneseq
    %v400 = vshrl.u32 %v399, 7
    %v401 = vsub.s32 %v398, %v400
    %v402 = vrot.slane %v393, %v401
    %v403 = vlaneseq
    %v404 = vshrl.u32 %v403, 7
    %v405 = vsub.s32 %v398, %v404
    %v406 = vrot.slane %v396, %v405
    %vm407 = vcmask 1041409
    %v408 = vsel %vm407, %v406, %v402
    %v410 = vsel %vm388, -1e+09, %v408
    %vm411 = vcmask 58368
    %v412 = vsel %vm411, %v410, -inf
    %413 = vmax.xlane.f32.xlu0 %v412
    %v414 = vpop.xlane.xlu0 %413
    %v415 = vsub.f32 %v410, %v414
    %v416 = vmul.f32 %v415, 1.442695
    %v417 = vpow.pop %v416
    %v418 = vsel %vm411, %v417, 0.0
    %419 = vadd.xlane.f32.xlu0 %v418
    %v420 = vpop.xlane.xlu0 %419
    %v421 = vrcp.pop %v420
    %v422 = vmul.f32 %v417, %v421
    %v425 = vunpack.c.l.s4 1966171168
    %v426 = vunpack.c.0.s8 %v425
    %v427 = vlaneseq
    %v428 = vshrl.u32 %v427, 7
    %v429 = vsub.s32 %v426, %v428
    %v430 = vrot.slane %v422, %v429
    %v431 = vcombine.high %v430, %v430
    %v433 = vunpack.c.l.s4 1966171168
    %v434 = vunpack.c.0.s8 %v433
    %v435 = vlaneseq
    %v436 = vshrl.u32 %v435, 7
    %v437 = vsub.s32 %v434, %v436
    %v438 = vrot.slane %v430, %v437
    %v440 = vunpack.c.l.s4 1966171168
    %v441 = vunpack.c.0.s8 %v440
    %v442 = vlaneseq
    %v443 = vshrl.u32 %v442, 7
    %v444 = vsub.s32 %v441, %v443
    %v445 = vrot.slane %v431, %v444
    %vm446 = vcmask 64512
    %v447 = vsel %vm446, %v438, 0
    %449 = vmatprep.subr.mxu0 0.0
    %450 = vmatpush1.msra.mxu0 %v90
    %451 = vmatprep.subr.mxu0 0.0
    %452 = vmatpush1.msra.mxu0 0.0
    %453 = vmatprep.subr.mxu0 0.0
    %454 = vmatpush1.msra.mxu0 0.0
    %455 = vmatprep.subr.mxu0 0.0
    %456 = vmatpush1.msra.mxu0 0.0
    %457 = vmatprep.subr.mxu0 0.0
    %458 = vmatpush1.msra.mxu0 0.0
    %459 = vmatprep.subr.mxu0 0.0
    %460 = vmatpush1.msra.mxu0 0.0
    %461 = vmatprep.subr.mxu0 0.0
    %462 = vmatpush1.msra.mxu0 0.0
    %463 = vmatprep.subr.mxu0 0.0
    %464 = vmatpush1.msra.mxu0 0.0
    %465 = vmatprep.subr.mxu0 0.0
    %466 = vmatpush1.msra.mxu0 0.0
    %467 = vmatprep.subr.mxu0 0.0
    %468 = vmatpush1.msra.mxu0 0.0
    %469 = vmatprep.subr.mxu0 0.0
    %470 = vmatpush1.msra.mxu0 0.0
    %471 = vmatprep.subr.mxu0 0.0
    %472 = vmatpush1.msra.mxu0 0.0
    %473 = vmatprep.subr.mxu0 0.0
    %474 = vmatpush1.msra.mxu0 0.0
    %475 = vmatprep.subr.mxu0 0.0
    %476 = vmatpush1.msra.mxu0 0.0
    %477 = vmatprep.subr.mxu0 0.0
    %478 = vmatpush1.msra.mxu0 0.0
    %479 = vmatprep.subr.mxu0 0.0
    %480 = vmatpush1.msra.mxu0 0.0
    %481 = vmatprep.subr.mxu0 0.0
    %482 = vmatpush1.msra.mxu0 0.0
    %483 = vmatprep.subr.mxu0 0.0
    %484 = vmatpush1.msra.mxu0 0.0
    %485 = vmatprep.subr.mxu0 0.0
    %486 = vmatpush1.msra.mxu0 0.0
    %487 = vmatprep.subr.mxu0 0.0
    %488 = vmatpush1.msra.mxu0 0.0
    %489 = vmatprep.subr.mxu0 0.0
    %490 = vmatpush1.msra.mxu0 0.0
    %491 = vmatprep.subr.mxu0 0.0
    %492 = vmatpush1.msra.mxu0 0.0
    %493 = vmatprep.subr.mxu0 0.0
    %494 = vmatpush1.msra.mxu0 0.0
    %495 = vmatprep.subr.mxu0 0.0
    %496 = vmatpush1.msra.mxu0 0.0
    %497 = vmatprep.subr.mxu0 0.0
    %498 = vmatpush1.msra.mxu0 0.0
    %499 = vmatprep.subr.mxu0 0.0
    %500 = vmatpush1.msra.mxu0 0.0
    %501 = vmatprep.subr.mxu0 0.0
    %502 = vmatpush1.msra.mxu0 0.0
    %503 = vmatprep.subr.mxu0 0.0
    %504 = vmatpush1.msra.mxu0 0.0
    %505 = vmatprep.subr.mxu0 0.0
    %506 = vmatpush1.msra.mxu0 0.0
    %507 = vmatprep.subr.mxu0 0.0
    %508 = vmatpush1.msra.mxu0 0.0
    %509 = vmatprep.subr.mxu0 0.0
    %510 = vmatpush1.msra.mxu0 0.0
    %511 = vmatprep.subr.mxu0 0.0
    %512 = vmatpush1.msra.mxu0 0.0
    %513 = vmatprep.mubr.f32.mxu0 0.0
    %514 = vmatmul.mubr.f32.gmra.mrb[0].mxu0 %v447
    %v515 = vpop.f32.mrb[0].mxu0
    %v516 = vadd.f32 0.0, %v515
    %v517 = vpop.f32.mrb[0].mxu0
    %518 = vdwg.mxu0
    %v519 = vsel %vm446, %v445, 0
    %521 = vmatprep.subr.mxu0 0.0
    %522 = vmatpush1.msra.mxu0 %v91
    %523 = vmatprep.subr.mxu0 0.0
    %524 = vmatpush1.msra.mxu0 0.0
    %525 = vmatprep.subr.mxu0 0.0
    %526 = vmatpush1.msra.mxu0 0.0
    %527 = vmatprep.subr.mxu0 0.0
    %528 = vmatpush1.msra.mxu0 0.0
    %529 = vmatprep.subr.mxu0 0.0
    %530 = vmatpush1.msra.mxu0 0.0
    %531 = vmatprep.subr.mxu0 0.0
    %532 = vmatpush1.msra.mxu0 0.0
    %533 = vmatprep.subr.mxu0 0.0
    %534 = vmatpush1.msra.mxu0 0.0
    %535 = vmatprep.subr.mxu0 0.0
    %536 = vmatpush1.msra.mxu0 0.0
    %537 = vmatprep.subr.mxu0 0.0
    %538 = vmatpush1.msra.mxu0 0.0
    %539 = vmatprep.subr.mxu0 0.0
    %540 = vmatpush1.msra.mxu0 0.0
    %541 = vmatprep.subr.mxu0 0.0
    %542 = vmatpush1.msra.mxu0 0.0
    %543 = vmatprep.subr.mxu0 0.0
    %544 = vmatpush1.msra.mxu0 0.0
    %545 = vmatprep.subr.mxu0 0.0
    %546 = vmatpush1.msra.mxu0 0.0
    %547 = vmatprep.subr.mxu0 0.0
    %548 = vmatpush1.msra.mxu0 0.0
    %549 = vmatprep.subr.mxu0 0.0
    %550 = vmatpush1.msra.mxu0 0.0
    %551 = vmatprep.subr.mxu0 0.0
    %552 = vmatpush1.msra.mxu0 0.0
    %553 = vmatprep.subr.mxu0 0.0
    %554 = vmatpush1.msra.mxu0 0.0
    %555 = vmatprep.subr.mxu0 0.0
    %556 = vmatpush1.msra.mxu0 0.0
    %557 = vmatprep.subr.mxu0 0.0
    %558 = vmatpush1.msra.mxu0 0.0
    %559 = vmatprep.subr.mxu0 0.0
    %560 = vmatpush1.msra.mxu0 0.0
    %561 = vmatprep.subr.mxu0 0.0
    %562 = vmatpush1.msra.mxu0 0.0
    %563 = vmatprep.subr.mxu0 0.0
    %564 = vmatpush1.msra.mxu0 0.0
    %565 = vmatprep.subr.mxu0 0.0
    %566 = vmatpush1.msra.mxu0 0.0
    %567 = vmatprep.subr.mxu0 0.0
    %568 = vmatpush1.msra.mxu0 0.0
    %569 = vmatprep.subr.mxu0 0.0
    %570 = vmatpush1.msra.mxu0 0.0
    %571 = vmatprep.subr.mxu0 0.0
    %572 = vmatpush1.msra.mxu0 0.0
    %573 = vmatprep.subr.mxu0 0.0
    %574 = vmatpush1.msra.mxu0 0.0
    %575 = vmatprep.subr.mxu0 0.0
    %576 = vmatpush1.msra.mxu0 0.0
    %577 = vmatprep.subr.mxu0 0.0
    %578 = vmatpush1.msra.mxu0 0.0
    %579 = vmatprep.subr.mxu0 0.0
    %580 = vmatpush1.msra.mxu0 0.0
    %581 = vmatprep.subr.mxu0 0.0
    %582 = vmatpush1.msra.mxu0 0.0
    %583 = vmatprep.subr.mxu0 0.0
    %584 = vmatpush1.msra.mxu0 0.0
    %585 = vmatprep.mubr.f32.mxu0 0.0
    %586 = vmatmul.mubr.f32.gmra.mrb[0].mxu0 %v519
    %v587 = vpop.f32.mrb[0].mxu0
    %v588 = vadd.f32 0.0, %v587
    %v589 = vpop.f32.mrb[0].mxu0
    %590 = vdwg.mxu0
    %v591 = vlaneseq
    %v592 = vshrl.u32 %v591, 7
    %v593 = vsub.s32 0, %v592
    %v594 = vrot.slane %v293, %v593
    %v597 = vrot.slane %v588, 7
    %v598 = vsel %vm407, %v597, %v516
    %v599 = vsel %vm104, %v598, 0
    %601 = vmatprep.subr.mxu0 0.0
    %602 = vmatpush1.msra.mxu0 %v285
    %603 = vmatprep.subr.mxu0 0.0
    %604 = vmatpush1.msra.mxu0 %v286
    %605 = vmatprep.subr.mxu0 0.0
    %606 = vmatpush1.msra.mxu0 %v287
    %607 = vmatprep.subr.mxu0 0.0
    %608 = vmatpush1.msra.mxu0 %v288
    %609 = vmatprep.subr.mxu0 0.0
    %610 = vmatpush1.msra.mxu0 0.0
    %611 = vmatprep.subr.mxu0 0.0
    %612 = vmatpush1.msra.mxu0 0.0
    %613 = vmatprep.subr.mxu0 0.0
    %614 = vmatpush1.msra.mxu0 0.0
    %615 = vmatprep.subr.mxu0 0.0
    %616 = vmatpush1.msra.mxu0 0.0
    %617 = vmatprep.subr.mxu0 0.0
    %618 = vmatpush1.msra.mxu0 0.0
    %619 = vmatprep.subr.mxu0 0.0
    %620 = vmatpush1.msra.mxu0 0.0
    %621 = vmatprep.subr.mxu0 0.0
    %622 = vmatpush1.msra.mxu0 0.0
    %623 = vmatprep.subr.mxu0 0.0
    %624 = vmatpush1.msra.mxu0 0.0
    %625 = vmatprep.subr.mxu0 0.0
    %626 = vmatpush1.msra.mxu0 0.0
    %627 = vmatprep.subr.mxu0 0.0
    %628 = vmatpush1.msra.mxu0 0.0
    %629 = vmatprep.subr.mxu0 0.0
    %630 = vmatpush1.msra.mxu0 0.0
    %631 = vmatprep.subr.mxu0 0.0
    %632 = vmatpush1.msra.mxu0 0.0
    %633 = vmatprep.subr.mxu0 0.0
    %634 = vmatpush1.msra.mxu0 0.0
    %635 = vmatprep.subr.mxu0 0.0
    %636 = vmatpush1.msra.mxu0 0.0
    %637 = vmatprep.subr.mxu0 0.0
    %638 = vmatpush1.msra.mxu0 0.0
    %639 = vmatprep.subr.mxu0 0.0
    %640 = vmatpush1.msra.mxu0 0.0
    %641 = vmatprep.subr.mxu0 0.0
    %642 = vmatpush1.msra.mxu0 0.0
    %643 = vmatprep.subr.mxu0 0.0
    %644 = vmatpush1.msra.mxu0 0.0
    %645 = vmatprep.subr.mxu0 0.0
    %646 = vmatpush1.msra.mxu0 0.0
    %647 = vmatprep.subr.mxu0 0.0
    %648 = vmatpush1.msra.mxu0 0.0
    %649 = vmatprep.subr.mxu0 0.0
    %650 = vmatpush1.msra.mxu0 0.0
    %651 = vmatprep.subr.mxu0 0.0
    %652 = vmatpush1.msra.mxu0 0.0
    %653 = vmatprep.subr.mxu0 0.0
    %654 = vmatpush1.msra.mxu0 0.0
    %655 = vmatprep.subr.mxu0 0.0
    %656 = vmatpush1.msra.mxu0 0.0
    %657 = vmatprep.subr.mxu0 0.0
    %658 = vmatpush1.msra.mxu0 0.0
    %659 = vmatprep.subr.mxu0 0.0
    %660 = vmatpush1.msra.mxu0 0.0
    %661 = vmatprep.subr.mxu0 0.0
    %662 = vmatpush1.msra.mxu0 0.0
    %663 = vmatprep.subr.mxu0 0.0
    %664 = vmatpush1.msra.mxu0 0.0
    %665 = vmatprep.mubr.f32.mxu0 0.0
    %666 = vmatmul.mubr.f32.gmra.mrb[0].mxu0 %v599
    %v667 = vpop.f32.mrb[0].mxu0
    %v668 = vadd.f32 %v594, %v667
    %v669 = vpop.f32.mrb[0].mxu0
    %670 = vdwg.mxu0
    %v671 = vlaneseq
    %v672 = vshrl.u32 %v671, 7
    %v673 = vsub.s32 1, %v672
    %v674 = vrot.slane %v267, %v673
    %v675 = vadd.f32 %v259, %v674
    %v676 = vadd.f32 %v264, %v674
    %v677 = vmax.f32 %v675, 0.0
    %v678 = vmax.f32 %v676, 0.0
    %v680 = vsel %vm302, %v677, 0
    %v683 = vsel %vm302, %v678, 0
    %685 = vmatprep.subr.mxu0 0.0
    %686 = vmatpush1.msra.mxu0 %v276
    %687 = vmatprep.subr.mxu0 0.0
    %688 = vmatpush1.msra.mxu0 %v277
    %689 = vmatprep.subr.mxu0 0.0
    %690 = vmatpush1.msra.mxu0 %v278
    %691 = vmatprep.subr.mxu0 0.0
    %692 = vmatpush1.msra.mxu0 %v279
    %693 = vmatprep.subr.mxu0 0.0
    %694 = vmatpush1.msra.mxu0 %v280
    %695 = vmatprep.subr.mxu0 0.0
    %696 = vmatpush1.msra.mxu0 %v281
    %697 = vmatprep.subr.mxu0 0.0
    %698 = vmatpush1.msra.mxu0 %v282
    %699 = vmatprep.subr.mxu0 0.0
    %700 = vmatpush1.msra.mxu0 %v283
    %701 = vmatprep.subr.mxu0 0.0
    %702 = vmatpush1.msra.mxu0 0.0
    %703 = vmatprep.subr.mxu0 0.0
    %704 = vmatpush1.msra.mxu0 0.0
    %705 = vmatprep.subr.mxu0 0.0
    %706 = vmatpush1.msra.mxu0 0.0
    %707 = vmatprep.subr.mxu0 0.0
    %708 = vmatpush1.msra.mxu0 0.0
    %709 = vmatprep.subr.mxu0 0.0
    %710 = vmatpush1.msra.mxu0 0.0
    %711 = vmatprep.subr.mxu0 0.0
    %712 = vmatpush1.msra.mxu0 0.0
    %713 = vmatprep.subr.mxu0 0.0
    %714 = vmatpush1.msra.mxu0 0.0
    %715 = vmatprep.subr.mxu0 0.0
    %716 = vmatpush1.msra.mxu0 0.0
    %717 = vmatprep.subr.mxu0 0.0
    %718 = vmatpush1.msra.mxu0 0.0
    %719 = vmatprep.subr.mxu0 0.0
    %720 = vmatpush1.msra.mxu0 0.0
    %721 = vmatprep.subr.mxu0 0.0
    %722 = vmatpush1.msra.mxu0 0.0
    %723 = vmatprep.subr.mxu0 0.0
    %724 = vmatpush1.msra.mxu0 0.0
    %725 = vmatprep.subr.mxu0 0.0
    %726 = vmatpush1.msra.mxu0 0.0
    %727 = vmatprep.subr.mxu0 0.0
    %728 = vmatpush1.msra.mxu0 0.0
    %729 = vmatprep.subr.mxu0 0.0
    %730 = vmatpush1.msra.mxu0 0.0
    %731 = vmatprep.subr.mxu0 0.0
    %732 = vmatpush1.msra.mxu0 0.0
    %733 = vmatprep.subr.mxu0 0.0
    %734 = vmatpush1.msra.mxu0 0.0
    %735 = vmatprep.subr.mxu0 0.0
    %736 = vmatpush1.msra.mxu0 0.0
    %737 = vmatprep.subr.mxu0 0.0
    %738 = vmatpush1.msra.mxu0 0.0
    %739 = vmatprep.subr.mxu0 0.0
    %740 = vmatpush1.msra.mxu0 0.0
    %741 = vmatprep.subr.mxu0 0.0
    %742 = vmatpush1.msra.mxu0 0.0
    %743 = vmatprep.subr.mxu0 0.0
    %744 = vmatpush1.msra.mxu0 0.0
    %745 = vmatprep.subr.mxu0 0.0
    %746 = vmatpush1.msra.mxu0 0.0
    %747 = vmatprep.subr.mxu0 0.0
    %748 = vmatpush1.msra.mxu0 0.0
    %749 = vmatprep.mubr.f32.mxu0 0.0
    %750 = vmatmul.mubr.f32.gmra.mrb[0].mxu0 %v680
    %v751 = vpop.f32.mrb[0].mxu0
    %v752 = vadd.f32 0.0, %v751
    %v753 = vpop.f32.mrb[0].mxu0
    %754 = vmatprep.mubr.f32.mxu0 0.0
    %755 = vmatmul.mubr.f32.gmra.mrb[0].mxu0 %v683
    %v756 = vpop.f32.mrb[0].mxu0
    %v757 = vadd.f32 0.0, %v756
    %v758 = vpop.f32.mrb[0].mxu0
    %759 = vdwg.mxu0
    %v760 = vrot.slane %v284, 1
    %s761 = vtos %v760
    %v762 = vstv %s761
    %v763 = vadd.f32 %v752, %v762
    %v764 = vadd.f32 %v757, %v762
    %vm765 = vcmp.gt.f32.partialorder %v95, 0.5
    %768 = vset.pattern.permute.xlu0 0
    %769 = vperm.xlu0 %768, %v763
    %v770 = vpop.permute.xlu0 %769
    %771 = vset.pattern.permute.xlu0 0
    %772 = vperm.xlu0 %771, %v764
    %v773 = vpop.permute.xlu0 %772
    %v774 = vlaneseq
    %v775 = vshrl.u32 %v774, 7
    %v776 = vsub.s32 %v398, %v775
    %v777 = vrot.slane %v770, %v776
    %v778 = vlaneseq
    %v779 = vshrl.u32 %v778, 7
    %v780 = vsub.s32 %v398, %v779
    %v781 = vrot.slane %v773, %v780
    %v782 = vsel %vm407, %v781, %v777
    %v784 = vsel %vm765, -1e+09, %v782
    %v785 = vsel %vm411, %v784, -inf
    %786 = vmax.xlane.f32.xlu0 %v785
    %v787 = vpop.xlane.xlu0 %786
    %v788 = vsub.f32 %v784, %v787
    %v789 = vmul.f32 %v788, 1.442695
    %v790 = vpow.pop %v789
    %v791 = vsel %vm411, %v790, 0.0
    %792 = vadd.xlane.f32.xlu0 %v791
    %v793 = vpop.xlane.xlu0 %792
    %v794 = vrcp.pop %v793
    %v795 = vmul.f32 %v790, %v794
    %v798 = vunpack.c.l.s4 1966171168
    %v799 = vunpack.c.0.s8 %v798
    %v800 = vlaneseq
    %v801 = vshrl.u32 %v800, 7
    %v802 = vsub.s32 %v799, %v801
    %v803 = vrot.slane %v795, %v802
    %v804 = vcombine.high %v803, %v803
    %v806 = vunpack.c.l.s4 1966171168
    %v807 = vunpack.c.0.s8 %v806
    %v808 = vlaneseq
    %v809 = vshrl.u32 %v808, 7
    %v810 = vsub.s32 %v807, %v809
    %v811 = vrot.slane %v803, %v810
    %v813 = vunpack.c.l.s4 1966171168
    %v814 = vunpack.c.0.s8 %v813
    %v815 = vlaneseq
    %v816 = vshrl.u32 %v815, 7
    %v817 = vsub.s32 %v814, %v816
    %v818 = vrot.slane %v804, %v817
    %v819 = vsel %vm446, %v811, 0
    %821 = vmatprep.subr.mxu0 0.0
    %822 = vmatpush1.msra.mxu0 %v92
    %823 = vmatprep.subr.mxu0 0.0
    %824 = vmatpush1.msra.mxu0 0.0
    %825 = vmatprep.subr.mxu0 0.0
    %826 = vmatpush1.msra.mxu0 0.0
    %827 = vmatprep.subr.mxu0 0.0
    %828 = vmatpush1.msra.mxu0 0.0
    %829 = vmatprep.subr.mxu0 0.0
    %830 = vmatpush1.msra.mxu0 0.0
    %831 = vmatprep.subr.mxu0 0.0
    %832 = vmatpush1.msra.mxu0 0.0
    %833 = vmatprep.subr.mxu0 0.0
    %834 = vmatpush1.msra.mxu0 0.0
    %835 = vmatprep.subr.mxu0 0.0
    %836 = vmatpush1.msra.mxu0 0.0
    %837 = vmatprep.subr.mxu0 0.0
    %838 = vmatpush1.msra.mxu0 0.0
    %839 = vmatprep.subr.mxu0 0.0
    %840 = vmatpush1.msra.mxu0 0.0
    %841 = vmatprep.subr.mxu0 0.0
    %842 = vmatpush1.msra.mxu0 0.0
    %843 = vmatprep.subr.mxu0 0.0
    %844 = vmatpush1.msra.mxu0 0.0
    %845 = vmatprep.subr.mxu0 0.0
    %846 = vmatpush1.msra.mxu0 0.0
    %847 = vmatprep.subr.mxu0 0.0
    %848 = vmatpush1.msra.mxu0 0.0
    %849 = vmatprep.subr.mxu0 0.0
    %850 = vmatpush1.msra.mxu0 0.0
    %851 = vmatprep.subr.mxu0 0.0
    %852 = vmatpush1.msra.mxu0 0.0
    %853 = vmatprep.subr.mxu0 0.0
    %854 = vmatpush1.msra.mxu0 0.0
    %855 = vmatprep.subr.mxu0 0.0
    %856 = vmatpush1.msra.mxu0 0.0
    %857 = vmatprep.subr.mxu0 0.0
    %858 = vmatpush1.msra.mxu0 0.0
    %859 = vmatprep.subr.mxu0 0.0
    %860 = vmatpush1.msra.mxu0 0.0
    %861 = vmatprep.subr.mxu0 0.0
    %862 = vmatpush1.msra.mxu0 0.0
    %863 = vmatprep.subr.mxu0 0.0
    %864 = vmatpush1.msra.mxu0 0.0
    %865 = vmatprep.subr.mxu0 0.0
    %866 = vmatpush1.msra.mxu0 0.0
    %867 = vmatprep.subr.mxu0 0.0
    %868 = vmatpush1.msra.mxu0 0.0
    %869 = vmatprep.subr.mxu0 0.0
    %870 = vmatpush1.msra.mxu0 0.0
    %871 = vmatprep.subr.mxu0 0.0
    %872 = vmatpush1.msra.mxu0 0.0
    %873 = vmatprep.subr.mxu0 0.0
    %874 = vmatpush1.msra.mxu0 0.0
    %875 = vmatprep.subr.mxu0 0.0
    %876 = vmatpush1.msra.mxu0 0.0
    %877 = vmatprep.subr.mxu0 0.0
    %878 = vmatpush1.msra.mxu0 0.0
    %879 = vmatprep.subr.mxu0 0.0
    %880 = vmatpush1.msra.mxu0 0.0
    %881 = vmatprep.subr.mxu0 0.0
    %882 = vmatpush1.msra.mxu0 0.0
    %883 = vmatprep.subr.mxu0 0.0
    %884 = vmatpush1.msra.mxu0 0.0
    %885 = vmatprep.mubr.f32.mxu0 0.0
    %886 = vmatmul.mubr.f32.gmra.mrb[0].mxu0 %v819
    %v887 = vpop.f32.mrb[0].mxu0
    %v888 = vadd.f32 0.0, %v887
    %v889 = vpop.f32.mrb[0].mxu0
    %890 = vdwg.mxu0
    %v891 = vsel %vm446, %v818, 0
    %893 = vmatprep.subr.mxu0 0.0
    %894 = vmatpush1.msra.mxu0 %v93
    %895 = vmatprep.subr.mxu0 0.0
    %896 = vmatpush1.msra.mxu0 0.0
    %897 = vmatprep.subr.mxu0 0.0
    %898 = vmatpush1.msra.mxu0 0.0
    %899 = vmatprep.subr.mxu0 0.0
    %900 = vmatpush1.msra.mxu0 0.0
    %901 = vmatprep.subr.mxu0 0.0
    %902 = vmatpush1.msra.mxu0 0.0
    %903 = vmatprep.subr.mxu0 0.0
    %904 = vmatpush1.msra.mxu0 0.0
    %905 = vmatprep.subr.mxu0 0.0
    %906 = vmatpush1.msra.mxu0 0.0
    %907 = vmatprep.subr.mxu0 0.0
    %908 = vmatpush1.msra.mxu0 0.0
    %909 = vmatprep.subr.mxu0 0.0
    %910 = vmatpush1.msra.mxu0 0.0
    %911 = vmatprep.subr.mxu0 0.0
    %912 = vmatpush1.msra.mxu0 0.0
    %913 = vmatprep.subr.mxu0 0.0
    %914 = vmatpush1.msra.mxu0 0.0
    %915 = vmatprep.subr.mxu0 0.0
    %916 = vmatpush1.msra.mxu0 0.0
    %917 = vmatprep.subr.mxu0 0.0
    %918 = vmatpush1.msra.mxu0 0.0
    %919 = vmatprep.subr.mxu0 0.0
    %920 = vmatpush1.msra.mxu0 0.0
    %921 = vmatprep.subr.mxu0 0.0
    %922 = vmatpush1.msra.mxu0 0.0
    %923 = vmatprep.subr.mxu0 0.0
    %924 = vmatpush1.msra.mxu0 0.0
    %925 = vmatprep.subr.mxu0 0.0
    %926 = vmatpush1.msra.mxu0 0.0
    %927 = vmatprep.subr.mxu0 0.0
    %928 = vmatpush1.msra.mxu0 0.0
    %929 = vmatprep.subr.mxu0 0.0
    %930 = vmatpush1.msra.mxu0 0.0
    %931 = vmatprep.subr.mxu0 0.0
    %932 = vmatpush1.msra.mxu0 0.0
    %933 = vmatprep.subr.mxu0 0.0
    %934 = vmatpush1.msra.mxu0 0.0
    %935 = vmatprep.subr.mxu0 0.0
    %936 = vmatpush1.msra.mxu0 0.0
    %937 = vmatprep.subr.mxu0 0.0
    %938 = vmatpush1.msra.mxu0 0.0
    %939 = vmatprep.subr.mxu0 0.0
    %940 = vmatpush1.msra.mxu0 0.0
    %941 = vmatprep.subr.mxu0 0.0
    %942 = vmatpush1.msra.mxu0 0.0
    %943 = vmatprep.subr.mxu0 0.0
    %944 = vmatpush1.msra.mxu0 0.0
    %945 = vmatprep.subr.mxu0 0.0
    %946 = vmatpush1.msra.mxu0 0.0
    %947 = vmatprep.subr.mxu0 0.0
    %948 = vmatpush1.msra.mxu0 0.0
    %949 = vmatprep.subr.mxu0 0.0
    %950 = vmatpush1.msra.mxu0 0.0
    %951 = vmatprep.subr.mxu0 0.0
    %952 = vmatpush1.msra.mxu0 0.0
    %953 = vmatprep.subr.mxu0 0.0
    %954 = vmatpush1.msra.mxu0 0.0
    %955 = vmatprep.subr.mxu0 0.0
    %956 = vmatpush1.msra.mxu0 0.0
    %957 = vmatprep.mubr.f32.mxu0 0.0
    %958 = vmatmul.mubr.f32.gmra.mrb[0].mxu0 %v891
    %v959 = vpop.f32.mrb[0].mxu0
    %v960 = vadd.f32 0.0, %v959
    %v961 = vpop.f32.mrb[0].mxu0
    %962 = vdwg.mxu0
    %v965 = vrot.slane %v960, 7
    %v966 = vsel %vm407, %v965, %v888
    %v967 = vsel %vm104, %v966, 0
    %969 = vmatprep.subr.mxu0 0.0
    %970 = vmatpush1.msra.mxu0 %v289
    %971 = vmatprep.subr.mxu0 0.0
    %972 = vmatpush1.msra.mxu0 %v290
    %973 = vmatprep.subr.mxu0 0.0
    %974 = vmatpush1.msra.mxu0 %v291
    %975 = vmatprep.subr.mxu0 0.0
    %976 = vmatpush1.msra.mxu0 %v292
    %977 = vmatprep.subr.mxu0 0.0
    %978 = vmatpush1.msra.mxu0 0.0
    %979 = vmatprep.subr.mxu0 0.0
    %980 = vmatpush1.msra.mxu0 0.0
    %981 = vmatprep.subr.mxu0 0.0
    %982 = vmatpush1.msra.mxu0 0.0
    %983 = vmatprep.subr.mxu0 0.0
    %984 = vmatpush1.msra.mxu0 0.0
    %985 = vmatprep.subr.mxu0 0.0
    %986 = vmatpush1.msra.mxu0 0.0
    %987 = vmatprep.subr.mxu0 0.0
    %988 = vmatpush1.msra.mxu0 0.0
    %989 = vmatprep.subr.mxu0 0.0
    %990 = vmatpush1.msra.mxu0 0.0
    %991 = vmatprep.subr.mxu0 0.0
    %992 = vmatpush1.msra.mxu0 0.0
    %993 = vmatprep.subr.mxu0 0.0
    %994 = vmatpush1.msra.mxu0 0.0
    %995 = vmatprep.subr.mxu0 0.0
    %996 = vmatpush1.msra.mxu0 0.0
    %997 = vmatprep.subr.mxu0 0.0
    %998 = vmatpush1.msra.mxu0 0.0
    %999 = vmatprep.subr.mxu0 0.0
    %1000 = vmatpush1.msra.mxu0 0.0
    %1001 = vmatprep.subr.mxu0 0.0
    %1002 = vmatpush1.msra.mxu0 0.0
    %1003 = vmatprep.subr.mxu0 0.0
    %1004 = vmatpush1.msra.mxu0 0.0
    %1005 = vmatprep.subr.mxu0 0.0
    %1006 = vmatpush1.msra.mxu0 0.0
    %1007 = vmatprep.subr.mxu0 0.0
    %1008 = vmatpush1.msra.mxu0 0.0
    %1009 = vmatprep.subr.mxu0 0.0
    %1010 = vmatpush1.msra.mxu0 0.0
    %1011 = vmatprep.subr.mxu0 0.0
    %1012 = vmatpush1.msra.mxu0 0.0
    %1013 = vmatprep.subr.mxu0 0.0
    %1014 = vmatpush1.msra.mxu0 0.0
    %1015 = vmatprep.subr.mxu0 0.0
    %1016 = vmatpush1.msra.mxu0 0.0
    %1017 = vmatprep.subr.mxu0 0.0
    %1018 = vmatpush1.msra.mxu0 0.0
    %1019 = vmatprep.subr.mxu0 0.0
    %1020 = vmatpush1.msra.mxu0 0.0
    %1021 = vmatprep.subr.mxu0 0.0
    %1022 = vmatpush1.msra.mxu0 0.0
    %1023 = vmatprep.subr.mxu0 0.0
    %1024 = vmatpush1.msra.mxu0 0.0
    %1025 = vmatprep.subr.mxu0 0.0
    %1026 = vmatpush1.msra.mxu0 0.0
    %1027 = vmatprep.subr.mxu0 0.0
    %1028 = vmatpush1.msra.mxu0 0.0
    %1029 = vmatprep.subr.mxu0 0.0
    %1030 = vmatpush1.msra.mxu0 0.0
    %1031 = vmatprep.subr.mxu0 0.0
    %1032 = vmatpush1.msra.mxu0 0.0
    %1033 = vmatprep.mubr.f32.mxu0 0.0
    %1034 = vmatmul.mubr.f32.gmra.mrb[0].mxu0 %v967
    %v1035 = vpop.f32.mrb[0].mxu0
    %v1036 = vadd.f32 0.0, %v1035
    %v1037 = vpop.f32.mrb[0].mxu0
    %1038 = vdwg.mxu0
    %v1039 = vadd.f32 %v668, %v1036
    %v1040 = vlaneseq
    %v1041 = vshrl.u32 %v1040, 7
    %v1042 = vsub.s32 1, %v1041
    %v1043 = vrot.slane %v293, %v1042
    %v1044 = vadd.f32 %v1039, %v1043
    %vm1045 = vcmask 254976
    %v1046 = vsel %vm1045, %v1044, 0.0
    %1047 = vadd.xlane.f32.xlu0 %v1046
    %v1048 = vpop.xlane.xlu0 %1047
    %v1049 = vrcp.pop 32.0
    %v1050 = vmul.f32 %v1048, %v1049
    %v1051 = vsub.f32 %v1044, %v1050
    %v1052 = vmul.f32 %v1051, %v1051
    %v1053 = vsel %vm1045, %v1052, 0.0
    %1054 = vadd.xlane.f32.xlu0 %v1053
    %v1055 = vpop.xlane.xlu0 %1054
    %v1056 = vmul.f32 %v1055, %v1049
    %v1057 = vld [vmem:[%s8] sm:$0x3]
    %v1058 = vadd.f32 %v1056, 1e-06
    %v1059 = vrsqrt.pop %v1058
    %v1060 = vmul.f32 %v1051, %v1059
    %v1061 = vlaneseq
    %v1062 = vshrl.u32 %v1061, 7
    %v1063 = vsub.s32 0, %v1062
    %v1064 = vrot.slane %v1057, %v1063
    %v1065 = vmul.f32 %v1060, %v1064
    %v1066 = vlaneseq
    %v1067 = vshrl.u32 %v1066, 7
    %v1068 = vsub.s32 1, %v1067
    %v1069 = vrot.slane %v1057, %v1068
    %v1070 = vadd.f32 %v1065, %v1069
    %v1071 = vld [vmem:[%s9] sm:$0xff]
    %v1072 = vld [vmem:[%s9 + $0x8] sm:$0xff]
    %v1073 = vld [vmem:[%s9 + $0x10] sm:$0xff]
    %v1074 = vld [vmem:[%s9 + $0x18] sm:$0xff]
    %v1075 = vld [vmem:[%s10] sm:$0x1]
    %v1077 = vlaneseq
    %v1078 = vshrl.u32 %v1077, 7
    %v1079 = vsub.s32 0, %v1078
    %v1080 = vrot.slane %v1075, %v1079
    %v1083 = vsel %vm104, %v1070, 0
    %1085 = vmatprep.subr.mxu0 0.0
    %1086 = vmatpush1.msra.mxu0 %v1071
    %1087 = vmatprep.subr.mxu0 0.0
    %1088 = vmatpush1.msra.mxu0 %v1072
    %1089 = vmatprep.subr.mxu0 0.0
    %1090 = vmatpush1.msra.mxu0 %v1073
    %1091 = vmatprep.subr.mxu0 0.0
    %1092 = vmatpush1.msra.mxu0 %v1074
    %1093 = vmatprep.subr.mxu0 0.0
    %1094 = vmatpush1.msra.mxu0 0.0
    %1095 = vmatprep.subr.mxu0 0.0
    %1096 = vmatpush1.msra.mxu0 0.0
    %1097 = vmatprep.subr.mxu0 0.0
    %1098 = vmatpush1.msra.mxu0 0.0
    %1099 = vmatprep.subr.mxu0 0.0
    %1100 = vmatpush1.msra.mxu0 0.0
    %1101 = vmatprep.subr.mxu0 0.0
    %1102 = vmatpush1.msra.mxu0 0.0
    %1103 = vmatprep.subr.mxu0 0.0
    %1104 = vmatpush1.msra.mxu0 0.0
    %1105 = vmatprep.subr.mxu0 0.0
    %1106 = vmatpush1.msra.mxu0 0.0
    %1107 = vmatprep.subr.mxu0 0.0
    %1108 = vmatpush1.msra.mxu0 0.0
    %1109 = vmatprep.subr.mxu0 0.0
    %1110 = vmatpush1.msra.mxu0 0.0
    %1111 = vmatprep.subr.mxu0 0.0
    %1112 = vmatpush1.msra.mxu0 0.0
    %1113 = vmatprep.subr.mxu0 0.0
    %1114 = vmatpush1.msra.mxu0 0.0
    %1115 = vmatprep.subr.mxu0 0.0
    %1116 = vmatpush1.msra.mxu0 0.0
    %1117 = vmatprep.subr.mxu0 0.0
    %1118 = vmatpush1.msra.mxu0 0.0
    %1119 = vmatprep.subr.mxu0 0.0
    %1120 = vmatpush1.msra.mxu0 0.0
    %1121 = vmatprep.subr.mxu0 0.0
    %1122 = vmatpush1.msra.mxu0 0.0
    %1123 = vmatprep.subr.mxu0 0.0
    %1124 = vmatpush1.msra.mxu0 0.0
    %1125 = vmatprep.subr.mxu0 0.0
    %1126 = vmatpush1.msra.mxu0 0.0
    %1127 = vmatprep.subr.mxu0 0.0
    %1128 = vmatpush1.msra.mxu0 0.0
    %1129 = vmatprep.subr.mxu0 0.0
    %1130 = vmatpush1.msra.mxu0 0.0
    %1131 = vmatprep.subr.mxu0 0.0
    %1132 = vmatpush1.msra.mxu0 0.0
    %1133 = vmatprep.subr.mxu0 0.0
    %1134 = vmatpush1.msra.mxu0 0.0
    %1135 = vmatprep.subr.mxu0 0.0
    %1136 = vmatpush1.msra.mxu0 0.0
    %1137 = vmatprep.subr.mxu0 0.0
    %1138 = vmatpush1.msra.mxu0 0.0
    %1139 = vmatprep.subr.mxu0 0.0
    %1140 = vmatpush1.msra.mxu0 0.0
    %1141 = vmatprep.subr.mxu0 0.0
    %1142 = vmatpush1.msra.mxu0 0.0
    %1143 = vmatprep.subr.mxu0 0.0
    %1144 = vmatpush1.msra.mxu0 0.0
    %1145 = vmatprep.subr.mxu0 0.0
    %1146 = vmatpush1.msra.mxu0 0.0
    %1147 = vmatprep.subr.mxu0 0.0
    %1148 = vmatpush1.msra.mxu0 0.0
    %1149 = vmatprep.mubr.f32.mxu0 0.0
    %1150 = vmatmul.mubr.f32.gmra.mrb[0].mxu0 %v1083
    %v1151 = vpop.f32.mrb[0].mxu0
    %v1152 = vadd.f32 %v1080, %v1151
    %v1153 = vpop.f32.mrb[0].mxu0
    %1154 = vdwg.mxu0
    %1155 = vst [vmem:[#allocation10] sm:$0x3] %v1152
    // Predicated region
    $region62: #{tpu_custom_call.1} parent=1 // pred_check
      _
    $region63: #{tpu_custom_call.1} parent=1 // pred_check_branch
      %1157 = sbr.rel (0) target = $region65
    $region64: #{tpu_custom_call.1} parent=1 // pred_region
      %s1159 = ssub.s32 32, 32
      %1160 = vsyncadd [#allocation4], %s1159
      %s1162 = sshll.u32 [#allocation10], 4
      %s1163 = int_to_ptr.vmem [resolvable:$true] %s1162
      %1165 = dma.vmem_to_hbm [thread:$0]  %s1163, 32, %s11, [#allocation4]
    $region65: #{tpu_custom_call.1} parent=1 // pred_fallthru
      _
    // Predicated region
    $region66: #{tpu_custom_call.1} parent=1 // pred_check
      _
    $region67: #{tpu_custom_call.1} parent=1 // pred_check_branch
      %1167 = sbr.rel (0) target = $region69
    $region68: #{tpu_custom_call.1} parent=1 // pred_region
      %1168 = dma.done [#allocation4], 32
    $region69: #{tpu_custom_call.1} parent=1 // pred_fallthru
      _
    %1169 = vsyncpa [#allocation3], 1
    %1170 = vsyncpa [#allocation6], 1
    %1171 = vsyncpa [#allocation9], 1
    %1172 = vsyncpa [#allocation4], 1

</llo_original>
